<compile_context>
chip_gen: v7x
topology: tpu7x:2x2x1
jax: 0.10.0
libtpu: 0.0.40
codegen_flags: <defaults>
</compile_context>

<pallas_src>
import functools

import numpy as np

import jax
import jax.numpy as jnp
from jax import lax
from jax.experimental import pallas as pl
from jax.experimental.pallas import tpu as pltpu


def _round_up(x, m):
    return (x + m - 1) // m * m


def _cdiv(a, b):
    return -(-a // b)


def _sublane_pack(dtype):
    # sublane packing of the compute dtype: f32 -> 8, bf16 -> 16, int8/fp8 -> 32
    return {4: 8, 2: 16, 1: 32}.get(jnp.dtype(dtype).itemsize, 8)


def _tile_vmem_bytes(th, wp, cin_p, cout, in_bytes, out_bytes, use_im2col):
    """Approximate per-grid-step VMEM footprint for a TH-row tile."""
    hw_t = _round_up(th * wp, 128)
    rows = _cdiv(hw_t + 2 * wp + 2, wp)
    l_tile = rows * wp
    b = 2 * cin_p * l_tile * in_bytes        # activation tile, double buffered
    b += 2 * cout * hw_t * out_bytes         # output tile, double buffered
    b += cout * 9 * cin_p * in_bytes         # weights, single buffered
    b += cout * hw_t * 4                     # f32 accumulator / MXU results
    if use_im2col:
        b += 9 * cin_p * hw_t * in_bytes     # im2col scratch
    return b


def _pick_tile_rows(h, wp, cin_p, cout, in_bytes, out_bytes, use_im2col, budget):
    """Largest TH in [1, H] whose footprint fits the VMEM budget."""
    th = h
    while th > 1 and _tile_vmem_bytes(th, wp, cin_p, cout, in_bytes, out_bytes,
                                      use_im2col) > budget:
        th -= 1
    return th


def _conv3x3_kernel(x_ref, w_ref, b_ref, o_ref, *scratch_refs,
                    wp, hw_t, cin_p, use_im2col):
    # x_ref: (1, 1, cin_p, l_tile)   flattened zero-padded input tile (+ halo)
    # w_ref: (Cout, 9*cin_p)          [im2col]   or (9, Cout, cin_p) [per-tap]
    # b_ref: (Cout, 1)                f32 bias column
    # o_ref: (1, 1, Cout, hw_t)       lane-dense (128-aligned) output slab
    # scratch_refs: (9*cin_p, hw_t) VMEM im2col scratch  [im2col mode only]
    x = x_ref[0, 0]                                        # (cin_p, l_tile)

    if use_im2col:
        patches_ref = scratch_refs[0]
        # Each tap is a lane-offset window; stores land at sublane-aligned
        # offsets (cin_p is a multiple of the dtype's sublane packing).
        for kh in range(3):
            for kw in range(3):
                t = kh * 3 + kw
                off = kh * wp + kw
                patches_ref[t * cin_p:(t + 1) * cin_p, :] = x[:, off:off + hw_t]
        acc = jnp.dot(w_ref[...], patches_ref[...],
                      preferred_element_type=jnp.float32)  # (Cout, hw_t) f32
    else:
        # Small-Cout path: 9 per-tap matmuls accumulated in f32; no scratch.
        acc = None
        for kh in range(3):
            for kw in range(3):
                t = kh * 3 + kw
                off = kh * wp + kw
                d = jnp.dot(w_ref[t], x[:, off:off + hw_t],
                            preferred_element_type=jnp.float32)
                acc = d if acc is None else acc + d

    # Bias add + dtype cast fused into the single unmasked lane-dense store.
    o_ref[0, 0] = (acc + b_ref[...]).astype(o_ref.dtype)


def conv_3_k_forward(x_nchw, weight, bias, *,
                     compute_dtype=jnp.bfloat16,
                     mode="auto",
                     tile_rows=None,
                     vmem_budget_bytes=32 * 1024 * 1024):
    """3x3 / stride 1 / padding 1 convolution (PyTorch Conv2d semantics).

    x_nchw: (N, Cin, H, W); weight: (Cout, Cin, 3, 3); bias: (Cout,)
    compute_dtype: MXU operand dtype (default bf16; pass jnp.float32 or None
                   for exact-precision operands). Accumulation is always f32
                   and the output keeps x's dtype.
    mode: "auto" (im2col iff Cout >= 128), "im2col", or "per_tap".
    tile_rows: output rows per spatial tile (auto-sized to the VMEM budget
               if None).  On v7x (64 MiB VMEM) pass a smaller
               vmem_budget_bytes (e.g. 24 MiB) or roughly half the tile.
    """
    N, Cin, H, W = x_nchw.shape
    Cout = weight.shape[0]
    out_dtype = x_nchw.dtype

    cdt = jnp.dtype(compute_dtype) if compute_dtype is not None else jnp.dtype(out_dtype)
    in_bytes = cdt.itemsize
    out_bytes = jnp.dtype(out_dtype).itemsize

    pack = _sublane_pack(cdt)
    cin_p = _round_up(Cin, pack)
    Wp = W + 2

    if mode == "auto":
        use_im2col = Cout >= 128
    elif mode == "im2col":
        use_im2col = True
    elif mode == "per_tap":
        use_im2col = False
    else:
        raise ValueError(f"unknown mode: {mode!r}")

    if tile_rows is None:
        tile_rows = _pick_tile_rows(H, Wp, cin_p, Cout, in_bytes, out_bytes,
                                    use_im2col, vmem_budget_bytes)
    TH = max(1, min(int(tile_rows), H))
    n_tiles = _cdiv(H, TH)

    # Per-tile output slab length, padded to 128 lanes so all stores are
    # unmasked; per-tile input slab covers every tap window of that slab.
    HW_t = _round_up(TH * Wp, 128)
    rows_per_tile = _cdiv(HW_t + 2 * Wp + 2, Wp)
    L_tile = rows_per_tile * Wp

    # Zero-pad: halo (top 1, bottom enough to cover the last tile's window),
    # width (1, 1), channels up to cin_p.  Then gather overlapping TH-row
    # tiles (the 3-row halo is duplicated once in HBM) and flatten.
    R_total = (n_tiles - 1) * TH + rows_per_tile
    pad_bottom = R_total - H - 1                       # >= 2 by construction

    x_pad = jnp.pad(x_nchw.astype(cdt),
                    ((0, 0), (0, cin_p - Cin), (1, pad_bottom), (1, 1)))
    row_idx = (np.arange(n_tiles, dtype=np.int32)[:, None] * TH
               + np.arange(rows_per_tile, dtype=np.int32)[None, :]).reshape(-1)
    x_tiles = jnp.take(x_pad, row_idx, axis=2)         # (N, cin_p, nT*rows, Wp)
    x_tiles = x_tiles.reshape(N, cin_p, n_tiles, L_tile)
    x_tiles = jnp.transpose(x_tiles, (0, 2, 1, 3))     # (N, n_tiles, cin_p, L_tile)

    # Weights: tap-major, channel-minor, channel axis padded to cin_p.
    w_pad = jnp.pad(weight, ((0, 0), (0, cin_p - Cin), (0, 0), (0, 0))).astype(cdt)
    if use_im2col:
        w_arg = jnp.transpose(w_pad, (0, 2, 3, 1)).reshape(Cout, 9 * cin_p)
        w_spec = pl.BlockSpec((Cout, 9 * cin_p), lambda n, t: (0, 0),
                              pipeline_mode=pl.Buffered(1))
        scratch = [pltpu.VMEM((9 * cin_p, HW_t), cdt)]
    else:
        w_arg = jnp.transpose(w_pad, (2, 3, 0, 1)).reshape(9, Cout, cin_p)
        w_spec = pl.BlockSpec((9, Cout, cin_p), lambda n, t: (0, 0, 0),
                              pipeline_mode=pl.Buffered(1))
        scratch = []
    b_arg = bias.reshape(Cout, 1).astype(jnp.float32)
    b_spec = pl.BlockSpec((Cout, 1), lambda n, t: (0, 0),
                          pipeline_mode=pl.Buffered(1))

    x_spec = pl.BlockSpec((1, 1, cin_p, L_tile), lambda n, t: (n, t, 0, 0))
    o_spec = pl.BlockSpec((1, 1, Cout, HW_t), lambda n, t: (n, t, 0, 0))

    footprint = _tile_vmem_bytes(TH, Wp, cin_p, Cout, in_bytes, out_bytes,
                                 use_im2col)
    vmem_limit = int(min(max(footprint + (8 << 20), 32 << 20), 100 << 20))

    cost = pl.CostEstimate(
        flops=2 * N * Cout * Cin * 9 * H * W,
        transcendentals=0,
        bytes_accessed=int(x_tiles.size * in_bytes + w_arg.size * in_bytes
                           + b_arg.size * 4
                           + N * n_tiles * Cout * HW_t * out_bytes),
    )

    kernel = functools.partial(_conv3x3_kernel, wp=Wp, hw_t=HW_t, cin_p=cin_p,
                               use_im2col=use_im2col)

    out_tiles = pl.pallas_call(
        kernel,
        out_shape=jax.ShapeDtypeStruct((N, n_tiles, Cout, HW_t), out_dtype),
        grid_spec=pltpu.PrefetchScalarGridSpec(
            num_scalar_prefetch=0,
            grid=(N, n_tiles),
            in_specs=[x_spec, w_spec, b_spec],
            out_specs=o_spec,
            scratch_shapes=scratch),
        compiler_params=pltpu.CompilerParams(
            dimension_semantics=("parallel", "parallel"),
            vmem_limit_bytes=vmem_limit),
        cost_estimate=cost,
    )(x_tiles, w_arg, b_arg)

    # Re-assemble: drop lane padding + junk columns/rows, restore NCHW.
    out = out_tiles[..., :TH * Wp].reshape(N, n_tiles, Cout, TH, Wp)
    out = jnp.transpose(out, (0, 2, 1, 3, 4)).reshape(N, Cout, n_tiles * TH, Wp)
    return out[:, :, :H, :W]


if __name__ == "__main__":
    key = jax.random.PRNGKey(0)
    k_x, k_w, k_b = jax.random.split(key, 3)

    N, Cin, Cout, H, W = 2, 4, 8, 16, 16

    x = jax.random.normal(k_x, (N, Cin, H, W), dtype=jnp.float32)

    # Deterministic init mimicking PyTorch Conv2d default (+/- 1/sqrt(fan_in))
    fan_in = Cin * 3 * 3
    bound = 1.0 / (fan_in ** 0.5)
    weight = jax.random.uniform(k_w, (Cout, Cin, 3, 3),
                                minval=-bound, maxval=bound, dtype=jnp.float32)
    bias = jax.random.uniform(k_b, (Cout,),
                              minval=-bound, maxval=bound, dtype=jnp.float32)

    ref = lax.conv_general_dilated(
        x, weight, window_strides=(1, 1), padding=((1, 1), (1, 1)),
        dimension_numbers=("NCHW", "OIHW", "NCHW"),
    ) + bias[None, :, None, None]

    # 1) Exact-precision operands (f32), auto -> per-tap variant, single tile.
    out_f32 = jax.block_until_ready(
        conv_3_k_forward(x, weight, bias, compute_dtype=jnp.float32))
    assert out_f32.shape == (N, Cout, H, W)
    assert jnp.allclose(out_f32, ref, atol=1e-4, rtol=1e-4)

    # 2) Default bf16 MXU path (per-tap variant), looser tolerance.
    out_bf16 = jax.block_until_ready(conv_3_k_forward(x, weight, bias))
    assert jnp.allclose(out_bf16, ref, atol=5e-2, rtol=5e-2)

    # 3) im2col variant (forced; normally used when Cout >= 128).
    out_im2col = jax.block_until_ready(
        conv_3_k_forward(x, weight, bias, mode="im2col"))
    assert jnp.allclose(out_im2col, ref, atol=5e-2, rtol=5e-2)

    # 4) Spatial tiling path (forces several row tiles + the halo gather).
    out_tiled = jax.block_until_ready(
        conv_3_k_forward(x, weight, bias, compute_dtype=jnp.float32,
                         tile_rows=5))
    assert jnp.allclose(out_tiled, ref, atol=1e-4, rtol=1e-4)

    print("KERNEL_OK")
</pallas_src>

<mosaic_0001>
module attributes {stable_mosaic.version = 11 : i64} {
  func.func @_conv3x3_kernel(%arg0: i32, %arg1: i32, %arg2: memref<1x1x8x432xf32, #tpu.memory_space<vmem>>, %arg3: memref<9x8x8xf32, #tpu.memory_space<vmem>>, %arg4: memref<8x1xf32, #tpu.memory_space<vmem>>, %arg5: memref<1x1x8x384xf32, #tpu.memory_space<vmem>>) attributes {dimension_semantics = [#tpu.dimension_semantics<parallel>, #tpu.dimension_semantics<parallel>], iteration_bounds = array<i64: 2, 1>, scalar_prefetch = 0 : i64, scratch_operands = 0 : i64, tpu.core_type = #tpu.core_type<tc>, window_params = [{transform_indices = @transform_0, window_bounds = array<i64: 1, 1, 8, 432>}, {pipeline_mode = #tpu.pipeline_mode<synchronous>, transform_indices = @transform_1, window_bounds = array<i64: 9, 8, 8>}, {pipeline_mode = #tpu.pipeline_mode<synchronous>, transform_indices = @transform_2, window_bounds = array<i64: 8, 1>}, {transform_indices = @transform_3, window_bounds = array<i64: 1, 1, 8, 384>}]} {
    %c0 = arith.constant 0 : index
    %c0_0 = arith.constant 0 : index
    %c0_1 = arith.constant 0 : index
    %c0_2 = arith.constant 0 : index
    %0 = vector.load %arg2[%c0, %c0_0, %c0_1, %c0_2] : memref<1x1x8x432xf32, #tpu.memory_space<vmem>>, vector<1x1x8x432xf32>
    %1 = vector.shape_cast %0 : vector<1x1x8x432xf32> to vector<8x432xf32>
    %c0_3 = arith.constant 0 : index
    %c0_4 = arith.constant 0 : index
    %c0_5 = arith.constant 0 : index
    %2 = vector.load %arg3[%c0_3, %c0_4, %c0_5] : memref<9x8x8xf32, #tpu.memory_space<vmem>>, vector<1x8x8xf32>
    %3 = vector.shape_cast %2 : vector<1x8x8xf32> to vector<8x8xf32>
    %4 = vector.extract_strided_slice %1 {offsets = [0, 0], sizes = [8, 384], strides = [1, 1]} : vector<8x432xf32> to vector<8x384xf32>
    %cst = arith.constant dense<0.000000e+00> : vector<8x384xf32>
    %5 = tpu.matmul %3, %4, %cst {dimension_numbers = #tpu.dot_dimension_numbers<[1], [0], [0], [1], [0, 0, 1, 1], [], []>} : vector<8x8xf32>, vector<8x384xf32>, vector<8x384xf32> -> vector<8x384xf32>
    %c1 = arith.constant 1 : index
    %c0_6 = arith.constant 0 : index
    %c0_7 = arith.constant 0 : index
    %6 = vector.load %arg3[%c1, %c0_6, %c0_7] : memref<9x8x8xf32, #tpu.memory_space<vmem>>, vector<1x8x8xf32>
    %7 = vector.shape_cast %6 : vector<1x8x8xf32> to vector<8x8xf32>
    %8 = vector.extract_strided_slice %1 {offsets = [0, 1], sizes = [8, 384], strides = [1, 1]} : vector<8x432xf32> to vector<8x384xf32>
    %cst_8 = arith.constant dense<0.000000e+00> : vector<8x384xf32>
    %9 = tpu.matmul %7, %8, %cst_8 {dimension_numbers = #tpu.dot_dimension_numbers<[1], [0], [0], [1], [0, 0, 1, 1], [], []>} : vector<8x8xf32>, vector<8x384xf32>, vector<8x384xf32> -> vector<8x384xf32>
    %10 = arith.addf %5, %9 : vector<8x384xf32>
    %c2 = arith.constant 2 : index
    %c0_9 = arith.constant 0 : index
    %c0_10 = arith.constant 0 : index
    %11 = vector.load %arg3[%c2, %c0_9, %c0_10] : memref<9x8x8xf32, #tpu.memory_space<vmem>>, vector<1x8x8xf32>
    %12 = vector.shape_cast %11 : vector<1x8x8xf32> to vector<8x8xf32>
    %13 = vector.extract_strided_slice %1 {offsets = [0, 2], sizes = [8, 384], strides = [1, 1]} : vector<8x432xf32> to vector<8x384xf32>
    %cst_11 = arith.constant dense<0.000000e+00> : vector<8x384xf32>
    %14 = tpu.matmul %12, %13, %cst_11 {dimension_numbers = #tpu.dot_dimension_numbers<[1], [0], [0], [1], [0, 0, 1, 1], [], []>} : vector<8x8xf32>, vector<8x384xf32>, vector<8x384xf32> -> vector<8x384xf32>
    %15 = arith.addf %10, %14 : vector<8x384xf32>
    %c3 = arith.constant 3 : index
    %c0_12 = arith.constant 0 : index
    %c0_13 = arith.constant 0 : index
    %16 = vector.load %arg3[%c3, %c0_12, %c0_13] : memref<9x8x8xf32, #tpu.memory_space<vmem>>, vector<1x8x8xf32>
    %17 = vector.shape_cast %16 : vector<1x8x8xf32> to vector<8x8xf32>
    %18 = vector.extract_strided_slice %1 {offsets = [0, 18], sizes = [8, 384], strides = [1, 1]} : vector<8x432xf32> to vector<8x384xf32>
    %cst_14 = arith.constant dense<0.000000e+00> : vector<8x384xf32>
    %19 = tpu.matmul %17, %18, %cst_14 {dimension_numbers = #tpu.dot_dimension_numbers<[1], [0], [0], [1], [0, 0, 1, 1], [], []>} : vector<8x8xf32>, vector<8x384xf32>, vector<8x384xf32> -> vector<8x384xf32>
    %20 = arith.addf %15, %19 : vector<8x384xf32>
    %c4 = arith.constant 4 : index
    %c0_15 = arith.constant 0 : index
    %c0_16 = arith.constant 0 : index
    %21 = vector.load %arg3[%c4, %c0_15, %c0_16] : memref<9x8x8xf32, #tpu.memory_space<vmem>>, vector<1x8x8xf32>
    %22 = vector.shape_cast %21 : vector<1x8x8xf32> to vector<8x8xf32>
    %23 = vector.extract_strided_slice %1 {offsets = [0, 19], sizes = [8, 384], strides = [1, 1]} : vector<8x432xf32> to vector<8x384xf32>
    %cst_17 = arith.constant dense<0.000000e+00> : vector<8x384xf32>
    %24 = tpu.matmul %22, %23, %cst_17 {dimension_numbers = #tpu.dot_dimension_numbers<[1], [0], [0], [1], [0, 0, 1, 1], [], []>} : vector<8x8xf32>, vector<8x384xf32>, vector<8x384xf32> -> vector<8x384xf32>
    %25 = arith.addf %20, %24 : vector<8x384xf32>
    %c5 = arith.constant 5 : index
    %c0_18 = arith.constant 0 : index
    %c0_19 = arith.constant 0 : index
    %26 = vector.load %arg3[%c5, %c0_18, %c0_19] : memref<9x8x8xf32, #tpu.memory_space<vmem>>, vector<1x8x8xf32>
    %27 = vector.shape_cast %26 : vector<1x8x8xf32> to vector<8x8xf32>
    %28 = vector.extract_strided_slice %1 {offsets = [0, 20], sizes = [8, 384], strides = [1, 1]} : vector<8x432xf32> to vector<8x384xf32>
    %cst_20 = arith.constant dense<0.000000e+00> : vector<8x384xf32>
    %29 = tpu.matmul %27, %28, %cst_20 {dimension_numbers = #tpu.dot_dimension_numbers<[1], [0], [0], [1], [0, 0, 1, 1], [], []>} : vector<8x8xf32>, vector<8x384xf32>, vector<8x384xf32> -> vector<8x384xf32>
    %30 = arith.addf %25, %29 : vector<8x384xf32>
    %c6 = arith.constant 6 : index
    %c0_21 = arith.constant 0 : index
    %c0_22 = arith.constant 0 : index
    %31 = vector.load %arg3[%c6, %c0_21, %c0_22] : memref<9x8x8xf32, #tpu.memory_space<vmem>>, vector<1x8x8xf32>
    %32 = vector.shape_cast %31 : vector<1x8x8xf32> to vector<8x8xf32>
    %33 = vector.extract_strided_slice %1 {offsets = [0, 36], sizes = [8, 384], strides = [1, 1]} : vector<8x432xf32> to vector<8x384xf32>
    %cst_23 = arith.constant dense<0.000000e+00> : vector<8x384xf32>
    %34 = tpu.matmul %32, %33, %cst_23 {dimension_numbers = #tpu.dot_dimension_numbers<[1], [0], [0], [1], [0, 0, 1, 1], [], []>} : vector<8x8xf32>, vector<8x384xf32>, vector<8x384xf32> -> vector<8x384xf32>
    %35 = arith.addf %30, %34 : vector<8x384xf32>
    %c7 = arith.constant 7 : index
    %c0_24 = arith.constant 0 : index
    %c0_25 = arith.constant 0 : index
    %36 = vector.load %arg3[%c7, %c0_24, %c0_25] : memref<9x8x8xf32, #tpu.memory_space<vmem>>, vector<1x8x8xf32>
    %37 = vector.shape_cast %36 : vector<1x8x8xf32> to vector<8x8xf32>
    %38 = vector.extract_strided_slice %1 {offsets = [0, 37], sizes = [8, 384], strides = [1, 1]} : vector<8x432xf32> to vector<8x384xf32>
    %cst_26 = arith.constant dense<0.000000e+00> : vector<8x384xf32>
    %39 = tpu.matmul %37, %38, %cst_26 {dimension_numbers = #tpu.dot_dimension_numbers<[1], [0], [0], [1], [0, 0, 1, 1], [], []>} : vector<8x8xf32>, vector<8x384xf32>, vector<8x384xf32> -> vector<8x384xf32>
    %40 = arith.addf %35, %39 : vector<8x384xf32>
    %c8 = arith.constant 8 : index
    %c0_27 = arith.constant 0 : index
    %c0_28 = arith.constant 0 : index
    %41 = vector.load %arg3[%c8, %c0_27, %c0_28] : memref<9x8x8xf32, #tpu.memory_space<vmem>>, vector<1x8x8xf32>
    %42 = vector.shape_cast %41 : vector<1x8x8xf32> to vector<8x8xf32>
    %43 = vector.extract_strided_slice %1 {offsets = [0, 38], sizes = [8, 384], strides = [1, 1]} : vector<8x432xf32> to vector<8x384xf32>
    %cst_29 = arith.constant dense<0.000000e+00> : vector<8x384xf32>
    %44 = tpu.matmul %42, %43, %cst_29 {dimension_numbers = #tpu.dot_dimension_numbers<[1], [0], [0], [1], [0, 0, 1, 1], [], []>} : vector<8x8xf32>, vector<8x384xf32>, vector<8x384xf32> -> vector<8x384xf32>
    %45 = arith.addf %40, %44 : vector<8x384xf32>
    %c0_30 = arith.constant 0 : index
    %c0_31 = arith.constant 0 : index
    %46 = vector.load %arg4[%c0_30, %c0_31] : memref<8x1xf32, #tpu.memory_space<vmem>>, vector<8x1xf32>
    %47 = vector.broadcast %46 : vector<8x1xf32> to vector<8x384xf32>
    %48 = arith.addf %45, %47 : vector<8x384xf32>
    %c0_32 = arith.constant 0 : index
    %c0_33 = arith.constant 0 : index
    %c0_34 = arith.constant 0 : index
    %c0_35 = arith.constant 0 : index
    %49 = vector.load %arg5[%c0_32, %c0_33, %c0_34, %c0_35] : memref<1x1x8x384xf32, #tpu.memory_space<vmem>>, vector<1x1x8x384xf32>
    %50 = vector.shape_cast %49 : vector<1x1x8x384xf32> to vector<8x384xf32>
    %51 = vector.shape_cast %48 : vector<8x384xf32> to vector<1x1x8x384xf32>
    tpu.vector_store %arg5[%c0_32, %c0_33, %c0_34, %c0_35], %51 {strides = array<i32>} : memref<1x1x8x384xf32, #tpu.memory_space<vmem>>, vector<1x1x8x384xf32>,
    return
  }
  func.func @transform_0(%arg0: i32, %arg1: i32) -> (i32, i32, i32, i32) {
    %c0_i32 = arith.constant 0 : i32
    %c0_i32_0 = arith.constant 0 : i32
    %c0_i32_1 = arith.constant 0 : i32
    return %arg0, %arg1, %c0_i32, %c0_i32_0 : i32, i32, i32, i32
  }
  func.func @transform_1(%arg0: i32, %arg1: i32) -> (i32, i32, i32) {
    %c0_i32 = arith.constant 0 : i32
    %c0_i32_0 = arith.constant 0 : i32
    %c0_i32_1 = arith.constant 0 : i32
    %c0_i32_2 = arith.constant 0 : i32
    return %c0_i32, %c0_i32_0, %c0_i32_1 : i32, i32, i32
  }
  func.func @transform_2(%arg0: i32, %arg1: i32) -> (i32, i32) {
    %c0_i32 = arith.constant 0 : i32
    %c0_i32_0 = arith.constant 0 : i32
    %c0_i32_1 = arith.constant 0 : i32
    return %c0_i32, %c0_i32_0 : i32, i32
  }
  func.func @transform_3(%arg0: i32, %arg1: i32) -> (i32, i32, i32, i32) {
    %c0_i32 = arith.constant 0 : i32
    %c0_i32_0 = arith.constant 0 : i32
    %c0_i32_1 = arith.constant 0 : i32
    return %arg0, %arg1, %c0_i32, %c0_i32_0 : i32, i32, i32, i32
  }
}

</mosaic_0001>

<llo_original>
// kernel: tpu_custom_call.1
$region0: #{tpu_custom_call.1}
  #allocation0 [shape = 'u32[]', space=smem, size = 0x4, offset = 0x4, fixed_abs, tag = 'smem constant byte address 0x4 - core index']
  #allocation1 [shape = 'u32[144,128]{1,0:T(1,128)}', space=vmem, size = 0x12000, scoped, tag = 'internal scratch']
  %s0 = inlined_call_operand.vmem [shape: f32[2,1,8,432], index: 0, kind: input, shape index: {}]
  %s1 = inlined_call_operand.vmem [shape: f32[9,8,8], index: 1, kind: input, shape index: {}]
  %s2 = inlined_call_operand.vmem [shape: f32[8,1], index: 2, kind: input, shape index: {}]
  %s3 = inlined_call_operand.hbm [shape: f32[2,1,8,384], index: 3, kind: output, shape index: {}]
  %s4 = sld [smem:[#allocation0]]
  $region45: #{tpu_custom_call.1} parent=0
    _
  %s6 = ssub.s32 1, %s4
  %s7 = scalar_select 0, %s6, %s4
  $region1: #{tpu_custom_call.1} parent=0
    #allocation2 [shape = 'u8[24576]{0}', space=vmem, size = 0x6000, scoped, tag = 'output window, operand 0']
    #allocation3 [shape = 's32[2]{0}', space=sflag, size = 0x8, scoped, tag = 'scoped memory for tpu_custom_call.1']
    %8 = vsyncpa [#allocation3], 0
    %s9 = scalar_lea.sflag [#allocation3], 1
    %10 = vsyncpa %s9, 0
    loop: start=0, step=1, limit=4
    $region2: #{tpu_custom_call.1} parent=1 // loop_pre_header
      _
    $region3: #{tpu_custom_call.1} parent=1 // loop_header
      %s12 = sphi 0, %s16
      %p13 = scmp.ge.s32.totalorder %s12, 4
      %s19 = sphi 0, %s31
      %s20 = sphi 0, %s27
      %s21 = sphi 0, %s19
      %s22 = sphi 0, %s20
      %s23 = sphi 0, %s21
      %s24 = sphi 0, %s22
      %s36 = sphi 0, %s38
      %s39 = sphi 0, %s36
      %s40 = sphi 0, %s39
      %s56 = sphi 0, %s40
      %s60 = sphi 0, %s60
      %s62 = sphi 0, %s60
      %s63 = sphi 0, %s62
      %s77 = sphi 0, %s63
      %s81 = sphi 0, %s81
      %s83 = sphi 0, %s81
      %s84 = sphi 0, %s83
      %s98 = sphi 0, %s84
      %s106 = sphi 0, %s108
      %s109 = sphi 0, %s106
      %s110 = sphi 0, %s109
      %s126 = sphi 0, %s110
    $region4: #{tpu_custom_call.1} parent=1 // loop_header_branch
      %15 = sbr.rel (%p13) target = $region8
    $region5: #{tpu_custom_call.1} parent=1 // loop_body
      %s17 = ssub.s32 %s12, 1
      %s18 = ssub.s32 %s12, 2
      %s25 = sadd.s32 1, %s20
      %p26 = scmp.ge.s32.totalorder %s25, 1
      %s27 = scalar_select %p26, 0, %s25
      %s28 = sadd.s32 1, %s19
      %s29 = scalar_select %p26, %s28, %s19
      %p30 = scmp.ge.s32.totalorder %s29, 2
      %s31 = scalar_select %p30, 0, %s29
      %s32 = ssub.s32 %s19, %s31
      %s33 = ssub.s32 %s20, %s27
      %s34 = sor.u32 %s32, %s33
      %p35 = scmp.eq.s32.totalorder %s34, 0
      %s37 = sadd.s32 %s36, 1
      %s38 = scalar_select %p35, %s36, %s37
      %p41 = pneg %p35
      %p42 = scmp.eq.s32.totalorder %s12, 1
      %p43 = por %p41, %p42
      %p44 = scmp.ne.s32.totalorder %s36, %s39
      %p45 = scmp.eq.s32.totalorder %s12, 0
      %p46 = por %p44, %p45
      %p47 = scmp.ne.s32.totalorder %s36, %s39
      %p48 = scmp.eq.s32.totalorder %s17, 1
      %p49 = por %p47, %p48
      %p50 = scmp.ne.s32.totalorder %s39, %s40
      %p51 = scmp.eq.s32.totalorder %s17, 0
      %p52 = por %p50, %p51
      %p53 = scmp.ne.s32.totalorder %s39, %s40
      %p54 = scmp.eq.s32.totalorder %s18, 1
      %p55 = por %p53, %p54
      %p57 = scmp.ne.s32.totalorder %s40, %s56
      %p58 = scmp.eq.s32.totalorder %s18, 0
      %p59 = por %p57, %p58
      %s61 = sadd.s32 %s60, 1
      %p64 = scmp.eq.s32.totalorder %s12, 1
      %p65 = scmp.ne.s32.totalorder %s60, %s62
      %p66 = scmp.eq.s32.totalorder %s12, 0
      %p67 = por %p65, %p66
      %p68 = scmp.ne.s32.totalorder %s60, %s62
      %p69 = scmp.eq.s32.totalorder %s17, 1
      %p70 = por %p68, %p69
      %p71 = scmp.ne.s32.totalorder %s62, %s63
      %p72 = scmp.eq.s32.totalorder %s17, 0
      %p73 = por %p71, %p72
      %p74 = scmp.ne.s32.totalorder %s62, %s63
      %p75 = scmp.eq.s32.totalorder %s18, 1
      %p76 = por %p74, %p75
      %p78 = scmp.ne.s32.totalorder %s63, %s77
      %p79 = scmp.eq.s32.totalorder %s18, 0
      %p80 = por %p78, %p79
      %s82 = sadd.s32 %s81, 1
      %p85 = scmp.eq.s32.totalorder %s12, 1
      %p86 = scmp.ne.s32.totalorder %s81, %s83
      %p87 = scmp.eq.s32.totalorder %s12, 0
      %p88 = por %p86, %p87
      %p89 = scmp.ne.s32.totalorder %s81, %s83
      %p90 = scmp.eq.s32.totalorder %s17, 1
      %p91 = por %p89, %p90
      %p92 = scmp.ne.s32.totalorder %s83, %s84
      %p93 = scmp.eq.s32.totalorder %s17, 0
      %p94 = por %p92, %p93
      %p95 = scmp.ne.s32.totalorder %s83, %s84
      %p96 = scmp.eq.s32.totalorder %s18, 1
      %p97 = por %p95, %p96
      %p99 = scmp.ne.s32.totalorder %s84, %s98
      %p100 = scmp.eq.s32.totalorder %s18, 0
      %p101 = por %p99, %p100
      %s102 = ssub.s32 %s19, %s31
      %s103 = ssub.s32 %s20, %s27
      %s104 = sor.u32 %s102, %s103
      %p105 = scmp.eq.s32.totalorder %s104, 0
      %s107 = sadd.s32 %s106, 1
      %s108 = scalar_select %p105, %s106, %s107
      %p111 = pneg %p105
      %p112 = scmp.eq.s32.totalorder %s12, 1
      %p113 = por %p111, %p112
      %p114 = scmp.ne.s32.totalorder %s106, %s109
      %p115 = scmp.eq.s32.totalorder %s12, 0
      %p116 = por %p114, %p115
      %p117 = scmp.ne.s32.totalorder %s106, %s109
      %p118 = scmp.eq.s32.totalorder %s17, 1
      %p119 = por %p117, %p118
      %p120 = scmp.ne.s32.totalorder %s109, %s110
      %p121 = scmp.eq.s32.totalorder %s17, 0
      %p122 = por %p120, %p121
      %p123 = scmp.ne.s32.totalorder %s109, %s110
      %p124 = scmp.eq.s32.totalorder %s18, 1
      %p125 = por %p123, %p124
      %p127 = scmp.ne.s32.totalorder %s110, %s126
      %p128 = scmp.eq.s32.totalorder %s18, 0
      %p129 = por %p127, %p128
      %p130 = scmp.le.s32.totalorder 1, %s12
      %p131 = scmp.lt.s32.totalorder %s12, 3
      %p132 = pnand %p130, %p131
      %p133 = pneg %p132
      // Predicated region
      $region9: #{tpu_custom_call.1} parent=5 // pred_check
        _
      $region10: #{tpu_custom_call.1} parent=5 // pred_check_branch
        %135 = sbr.rel (%p132) target = $region12
      $region11: #{tpu_custom_call.1} parent=5 // pred_region
        %s136 = ssub.s32 %s12, 1
        // Predicated region
        $region13: #{tpu_custom_call.1} parent=11 // pred_check
          %p137 = pneg %p73
        $region14: #{tpu_custom_call.1} parent=11 // pred_check_branch
          %139 = sbr.rel (%p137) target = $region16
        $region15: #{tpu_custom_call.1} parent=11 // pred_region
          _
        $region16: #{tpu_custom_call.1} parent=11 // pred_fallthru
          _
        // Predicated region
        $region17: #{tpu_custom_call.1} parent=11 // pred_check
          %p140 = pneg %p94
        $region18: #{tpu_custom_call.1} parent=11 // pred_check_branch
          %142 = sbr.rel (%p140) target = $region20
        $region19: #{tpu_custom_call.1} parent=11 // pred_region
          _
        $region20: #{tpu_custom_call.1} parent=11 // pred_fallthru
          _
      $region12: #{tpu_custom_call.1} parent=5 // pred_fallthru
        _
      %p143 = scmp.lt.s32.totalorder %s12, 2
      // Predicated region
      $region21: #{tpu_custom_call.1} parent=5 // pred_check
        %p144 = pneg %p143
      $region22: #{tpu_custom_call.1} parent=5 // pred_check_branch
        %146 = sbr.rel (%p144) target = $region24
      $region23: #{tpu_custom_call.1} parent=5 // pred_region
        // Predicated region
        $region25: #{tpu_custom_call.1} parent=23 // pred_check
          %p147 = pneg %p46
        $region26: #{tpu_custom_call.1} parent=23 // pred_check_branch
          %149 = sbr.rel (%p147) target = $region28
        $region27: #{tpu_custom_call.1} parent=23 // pred_region
          %p150 = scmp.lt.s32.totalorder %s19, 1
          %s151 = scalar_select %p150, %s19, 1
          %p152 = scmp.lt.s32.totalorder %s20, 0
          %s153 = scalar_select %p152, %s20, 0
          %s154 = smul.addr %s153, 4
          %s155 = smul.addr %s151, 4
          %s156 = sadd.s32 %s154, %s155
          %s157 = smul.addr %s156, 8
          %s158 = scalar_lea.vmem %s0, %s157
        $region28: #{tpu_custom_call.1} parent=23 // pred_fallthru
          _
      $region24: #{tpu_custom_call.1} parent=5 // pred_fallthru
        _
      %p159 = scmp.le.s32.totalorder 1, %s12
      %p160 = scmp.lt.s32.totalorder %s12, 3
      %p161 = pnand %p159, %p160
      %p162 = pneg %p161
      // Predicated region
      $region29: #{tpu_custom_call.1} parent=5 // pred_check
        _
      $region30: #{tpu_custom_call.1} parent=5 // pred_check_branch
        %164 = sbr.rel (%p161) target = $region32
      $region31: #{tpu_custom_call.1} parent=5 // pred_region
        %s165 = ssub.s32 %s12, 1
        %p166 = scmp.lt.s32.totalorder %s21, 1
        %s167 = scalar_select %p166, %s21, 1
        %p168 = scmp.lt.s32.totalorder %s22, 0
        %s169 = scalar_select %p168, %s22, 0
        %s170 = smul.addr %s169, 4
        %s171 = smul.addr %s167, 4
        %s172 = sadd.s32 %s170, %s171
        %s173 = smul.addr %s172, 8
        %s174 = scalar_lea.vmem %s0, %s173
        %p175 = pneg %p52
        %p176 = pneg %p49
        %p177 = pneg %p73
        %p178 = pneg %p70
        %p179 = pneg %p94
        %p180 = pneg %p91
        %p181 = pneg %p122
        %p182 = pneg %p119
        %s183 = sand.u32 %s109, 1
        %s184 = scalar_lea.sflag [#allocation3], %s183
        %s185 = sand.u32 %s109, 1
        %s186 = smul.addr %s185, 24
        %s187 = scalar_lea.vmem [#allocation2], %s186
        %p188 = scmp.lt.s32.totalorder %s21, 1
        %s189 = scalar_select %p188, %s21, 1
        %p190 = scmp.lt.s32.totalorder %s22, 0
        %s191 = scalar_select %p190, %s22, 0
        %s192 = smul.addr %s191, 4
        %s193 = smul.addr %s189, 4
        %s194 = sadd.s32 %s192, %s193
        %s195 = smul.addr %s194, 8
        %s196 = scalar_lea.vmem %s0, %s195
        %v197 = vld [vmem:[%s196] sm:$0xff]
        %v198 = vld [vmem:[%s196 + $0x8] sm:$0xff]
        %v199 = vld [vmem:[%s196 + $0x10] sm:$0xff]
        %v200 = vld [vmem:[%s196 + $0x18] sm:$0xff]
        %v201 = vld [vmem:[%s1] sm:$0xff]
        %s202 = scalar_lea.vmem %s1, 8
        %v203 = vld [vmem:[%s202] sm:$0xff]
        %208 = vrot.lane.b32.xlu0 %v197, 127
        %v209 = vpop.permute.xlu0 %208
        %210 = vrot.lane.b32.xlu0 %v198, 127
        %v211 = vpop.permute.xlu0 %210
        %212 = vrot.lane.b32.xlu0 %v199, 127
        %v213 = vpop.permute.xlu0 %212
        %214 = vrot.lane.b32.xlu0 %v200, 127
        %v215 = vpop.permute.xlu0 %214
        %vm216 = vcmask 1039360
        %v217 = vsel %vm216, %v209, %v211
        %v218 = vsel %vm216, %v211, %v213
        %v219 = vsel %vm216, %v213, %v215
        %vm223 = vcmask 64512
        %v225 = vsel %vm223, %v203, 0
        %227 = vmatprep.subr.mxu0 %v218
        %228 = vmatpush1.msra.mxu0 %v217
        %229 = vmatprep.subr.mxu0 0.0
        %230 = vmatpush1.msra.mxu0 0.0
        %231 = vmatprep.subr.mxu0 0.0
        %232 = vmatpush1.msra.mxu0 0.0
        %233 = vmatprep.subr.mxu0 0.0
        %234 = vmatpush1.msra.mxu0 0.0
        %235 = vmatprep.subr.mxu0 0.0
        %236 = vmatpush1.msra.mxu0 0.0
        %237 = vmatprep.subr.mxu0 0.0
        %238 = vmatpush1.msra.mxu0 0.0
        %239 = vmatprep.subr.mxu0 0.0
        %240 = vmatpush1.msra.mxu0 0.0
        %241 = vmatprep.subr.mxu0 0.0
        %242 = vmatpush1.msra.mxu0 0.0
        %243 = vmatprep.subr.mxu0 0.0
        %244 = vmatpush1.msra.mxu0 0.0
        %245 = vmatprep.subr.mxu0 0.0
        %246 = vmatpush1.msra.mxu0 0.0
        %247 = vmatprep.subr.mxu0 0.0
        %248 = vmatpush1.msra.mxu0 0.0
        %249 = vmatprep.subr.mxu0 0.0
        %250 = vmatpush1.msra.mxu0 0.0
        %251 = vmatprep.subr.mxu0 0.0
        %252 = vmatpush1.msra.mxu0 0.0
        %253 = vmatprep.subr.mxu0 0.0
        %254 = vmatpush1.msra.mxu0 0.0
        %255 = vmatprep.subr.mxu0 0.0
        %256 = vmatpush1.msra.mxu0 0.0
        %257 = vmatprep.subr.mxu0 0.0
        %258 = vmatpush1.msra.mxu0 0.0
        %259 = vmatprep.subr.mxu0 0.0
        %260 = vmatpush1.msra.mxu0 0.0
        %261 = vmatprep.subr.mxu0 0.0
        %262 = vmatpush1.msra.mxu0 0.0
        %263 = vmatprep.subr.mxu0 0.0
        %264 = vmatpush1.msra.mxu0 0.0
        %265 = vmatprep.subr.mxu0 0.0
        %266 = vmatpush1.msra.mxu0 0.0
        %267 = vmatprep.subr.mxu0 0.0
        %268 = vmatpush1.msra.mxu0 0.0
        %269 = vmatprep.subr.mxu0 0.0
        %270 = vmatpush1.msra.mxu0 0.0
        %271 = vmatprep.subr.mxu0 0.0
        %272 = vmatpush1.msra.mxu0 0.0
        %273 = vmatprep.subr.mxu0 0.0
        %274 = vmatpush1.msra.mxu0 0.0
        %275 = vmatprep.subr.mxu0 0.0
        %276 = vmatpush1.msra.mxu0 0.0
        %277 = vmatprep.subr.mxu0 0.0
        %278 = vmatpush1.msra.mxu0 0.0
        %279 = vmatprep.subr.mxu0 0.0
        %280 = vmatpush1.msra.mxu0 0.0
        %281 = vmatprep.subr.mxu0 0.0
        %282 = vmatpush1.msra.mxu0 0.0
        %283 = vmatprep.subr.mxu0 0.0
        %284 = vmatpush1.msra.mxu0 0.0
        %285 = vmatprep.subr.mxu0 0.0
        %286 = vmatpush1.msra.mxu0 0.0
        %287 = vmatprep.subr.mxu0 0.0
        %288 = vmatpush1.msra.mxu0 0.0
        %289 = vmatprep.subr.mxu0 0.0
        %290 = vmatpush1.msra.mxu0 0.0
        %291 = vmatprep.mubr.f32.mxu0 0.0
        %292 = vmatmul.mubr.f32.gmra.mrb[0].mxu0 %v225
        %v293 = vpop.f32.mrb[0].mxu0
        %v294 = vadd.f32 0.0, %v293
        %v295 = vpop.f32.mrb[0].mxu0
        %v296 = vadd.f32 0.0, %v295
        %297 = vdwg.mxu0
        %298 = vmatprep.subr.mxu0 0.0
        %299 = vmatpush1.msra.mxu0 %v219
        %300 = vmatprep.subr.mxu0 0.0
        %301 = vmatpush1.msra.mxu0 0.0
        %302 = vmatprep.subr.mxu0 0.0
        %303 = vmatpush1.msra.mxu0 0.0
        %304 = vmatprep.subr.mxu0 0.0
        %305 = vmatpush1.msra.mxu0 0.0
        %306 = vmatprep.subr.mxu0 0.0
        %307 = vmatpush1.msra.mxu0 0.0
        %308 = vmatprep.subr.mxu0 0.0
        %309 = vmatpush1.msra.mxu0 0.0
        %310 = vmatprep.subr.mxu0 0.0
        %311 = vmatpush1.msra.mxu0 0.0
        %312 = vmatprep.subr.mxu0 0.0
        %313 = vmatpush1.msra.mxu0 0.0
        %314 = vmatprep.subr.mxu0 0.0
        %315 = vmatpush1.msra.mxu0 0.0
        %316 = vmatprep.subr.mxu0 0.0
        %317 = vmatpush1.msra.mxu0 0.0
        %318 = vmatprep.subr.mxu0 0.0
        %319 = vmatpush1.msra.mxu0 0.0
        %320 = vmatprep.subr.mxu0 0.0
        %321 = vmatpush1.msra.mxu0 0.0
        %322 = vmatprep.subr.mxu0 0.0
        %323 = vmatpush1.msra.mxu0 0.0
        %324 = vmatprep.subr.mxu0 0.0
        %325 = vmatpush1.msra.mxu0 0.0
        %326 = vmatprep.subr.mxu0 0.0
        %327 = vmatpush1.msra.mxu0 0.0
        %328 = vmatprep.subr.mxu0 0.0
        %329 = vmatpush1.msra.mxu0 0.0
        %330 = vmatprep.subr.mxu0 0.0
        %331 = vmatpush1.msra.mxu0 0.0
        %332 = vmatprep.subr.mxu0 0.0
        %333 = vmatpush1.msra.mxu0 0.0
        %334 = vmatprep.subr.mxu0 0.0
        %335 = vmatpush1.msra.mxu0 0.0
        %336 = vmatprep.subr.mxu0 0.0
        %337 = vmatpush1.msra.mxu0 0.0
        %338 = vmatprep.subr.mxu0 0.0
        %339 = vmatpush1.msra.mxu0 0.0
        %340 = vmatprep.subr.mxu0 0.0
        %341 = vmatpush1.msra.mxu0 0.0
        %342 = vmatprep.subr.mxu0 0.0
        %343 = vmatpush1.msra.mxu0 0.0
        %344 = vmatprep.subr.mxu0 0.0
        %345 = vmatpush1.msra.mxu0 0.0
        %346 = vmatprep.subr.mxu0 0.0
        %347 = vmatpush1.msra.mxu0 0.0
        %348 = vmatprep.subr.mxu0 0.0
        %349 = vmatpush1.msra.mxu0 0.0
        %350 = vmatprep.subr.mxu0 0.0
        %351 = vmatpush1.msra.mxu0 0.0
        %352 = vmatprep.subr.mxu0 0.0
        %353 = vmatpush1.msra.mxu0 0.0
        %354 = vmatprep.subr.mxu0 0.0
        %355 = vmatpush1.msra.mxu0 0.0
        %356 = vmatprep.subr.mxu0 0.0
        %357 = vmatpush1.msra.mxu0 0.0
        %358 = vmatprep.subr.mxu0 0.0
        %359 = vmatpush1.msra.mxu0 0.0
        %360 = vmatprep.subr.mxu0 0.0
        %361 = vmatpush1.msra.mxu0 0.0
        %362 = vmatprep.mubr.f32.mxu0 0.0
        %363 = vmatmul.mubr.f32.gmra.mrb[0].mxu0 %v225
        %v364 = vpop.f32.mrb[0].mxu0
        %v365 = vadd.f32 0.0, %v364
        %v366 = vpop.f32.mrb[0].mxu0
        %367 = vdwg.mxu0
        %v369 = vsel %vm223, %v201, 0
        %371 = vmatprep.subr.mxu0 %v198
        %372 = vmatpush1.msra.mxu0 %v197
        %373 = vmatprep.subr.mxu0 0.0
        %374 = vmatpush1.msra.mxu0 0.0
        %375 = vmatprep.subr.mxu0 0.0
        %376 = vmatpush1.msra.mxu0 0.0
        %377 = vmatprep.subr.mxu0 0.0
        %378 = vmatpush1.msra.mxu0 0.0
        %379 = vmatprep.subr.mxu0 0.0
        %380 = vmatpush1.msra.mxu0 0.0
        %381 = vmatprep.subr.mxu0 0.0
        %382 = vmatpush1.msra.mxu0 0.0
        %383 = vmatprep.subr.mxu0 0.0
        %384 = vmatpush1.msra.mxu0 0.0
        %385 = vmatprep.subr.mxu0 0.0
        %386 = vmatpush1.msra.mxu0 0.0
        %387 = vmatprep.subr.mxu0 0.0
        %388 = vmatpush1.msra.mxu0 0.0
        %389 = vmatprep.subr.mxu0 0.0
        %390 = vmatpush1.msra.mxu0 0.0
        %391 = vmatprep.subr.mxu0 0.0
        %392 = vmatpush1.msra.mxu0 0.0
        %393 = vmatprep.subr.mxu0 0.0
        %394 = vmatpush1.msra.mxu0 0.0
        %395 = vmatprep.subr.mxu0 0.0
        %396 = vmatpush1.msra.mxu0 0.0
        %397 = vmatprep.subr.mxu0 0.0
        %398 = vmatpush1.msra.mxu0 0.0
        %399 = vmatprep.subr.mxu0 0.0
        %400 = vmatpush1.msra.mxu0 0.0
        %401 = vmatprep.subr.mxu0 0.0
        %402 = vmatpush1.msra.mxu0 0.0
        %403 = vmatprep.subr.mxu0 0.0
        %404 = vmatpush1.msra.mxu0 0.0
        %405 = vmatprep.subr.mxu0 0.0
        %406 = vmatpush1.msra.mxu0 0.0
        %407 = vmatprep.subr.mxu0 0.0
        %408 = vmatpush1.msra.mxu0 0.0
        %409 = vmatprep.subr.mxu0 0.0
        %410 = vmatpush1.msra.mxu0 0.0
        %411 = vmatprep.subr.mxu0 0.0
        %412 = vmatpush1.msra.mxu0 0.0
        %413 = vmatprep.subr.mxu0 0.0
        %414 = vmatpush1.msra.mxu0 0.0
        %415 = vmatprep.subr.mxu0 0.0
        %416 = vmatpush1.msra.mxu0 0.0
        %417 = vmatprep.subr.mxu0 0.0
        %418 = vmatpush1.msra.mxu0 0.0
        %419 = vmatprep.subr.mxu0 0.0
        %420 = vmatpush1.msra.mxu0 0.0
        %421 = vmatprep.subr.mxu0 0.0
        %422 = vmatpush1.msra.mxu0 0.0
        %423 = vmatprep.subr.mxu0 0.0
        %424 = vmatpush1.msra.mxu0 0.0
        %425 = vmatprep.subr.mxu0 0.0
        %426 = vmatpush1.msra.mxu0 0.0
        %427 = vmatprep.subr.mxu0 0.0
        %428 = vmatpush1.msra.mxu0 0.0
        %429 = vmatprep.subr.mxu0 0.0
        %430 = vmatpush1.msra.mxu0 0.0
        %431 = vmatprep.subr.mxu0 0.0
        %432 = vmatpush1.msra.mxu0 0.0
        %433 = vmatprep.subr.mxu0 0.0
        %434 = vmatpush1.msra.mxu0 0.0
        %435 = vmatprep.mubr.f32.mxu0 0.0
        %436 = vmatmul.mubr.f32.gmra.mrb[0].mxu0 %v369
        %v437 = vpop.f32.mrb[0].mxu0
        %v438 = vadd.f32 %v294, %v437
        %v439 = vpop.f32.mrb[0].mxu0
        %v440 = vadd.f32 %v296, %v439
        %441 = vdwg.mxu0
        %442 = vmatprep.subr.mxu0 0.0
        %443 = vmatpush1.msra.mxu0 %v199
        %444 = vmatprep.subr.mxu0 0.0
        %445 = vmatpush1.msra.mxu0 0.0
        %446 = vmatprep.subr.mxu0 0.0
        %447 = vmatpush1.msra.mxu0 0.0
        %448 = vmatprep.subr.mxu0 0.0
        %449 = vmatpush1.msra.mxu0 0.0
        %450 = vmatprep.subr.mxu0 0.0
        %451 = vmatpush1.msra.mxu0 0.0
        %452 = vmatprep.subr.mxu0 0.0
        %453 = vmatpush1.msra.mxu0 0.0
        %454 = vmatprep.subr.mxu0 0.0
        %455 = vmatpush1.msra.mxu0 0.0
        %456 = vmatprep.subr.mxu0 0.0
        %457 = vmatpush1.msra.mxu0 0.0
        %458 = vmatprep.subr.mxu0 0.0
        %459 = vmatpush1.msra.mxu0 0.0
        %460 = vmatprep.subr.mxu0 0.0
        %461 = vmatpush1.msra.mxu0 0.0
        %462 = vmatprep.subr.mxu0 0.0
        %463 = vmatpush1.msra.mxu0 0.0
        %464 = vmatprep.subr.mxu0 0.0
        %465 = vmatpush1.msra.mxu0 0.0
        %466 = vmatprep.subr.mxu0 0.0
        %467 = vmatpush1.msra.mxu0 0.0
        %468 = vmatprep.subr.mxu0 0.0
        %469 = vmatpush1.msra.mxu0 0.0
        %470 = vmatprep.subr.mxu0 0.0
        %471 = vmatpush1.msra.mxu0 0.0
        %472 = vmatprep.subr.mxu0 0.0
        %473 = vmatpush1.msra.mxu0 0.0
        %474 = vmatprep.subr.mxu0 0.0
        %475 = vmatpush1.msra.mxu0 0.0
        %476 = vmatprep.subr.mxu0 0.0
        %477 = vmatpush1.msra.mxu0 0.0
        %478 = vmatprep.subr.mxu0 0.0
        %479 = vmatpush1.msra.mxu0 0.0
        %480 = vmatprep.subr.mxu0 0.0
        %481 = vmatpush1.msra.mxu0 0.0
        %482 = vmatprep.subr.mxu0 0.0
        %483 = vmatpush1.msra.mxu0 0.0
        %484 = vmatprep.subr.mxu0 0.0
        %485 = vmatpush1.msra.mxu0 0.0
        %486 = vmatprep.subr.mxu0 0.0
        %487 = vmatpush1.msra.mxu0 0.0
        %488 = vmatprep.subr.mxu0 0.0
        %489 = vmatpush1.msra.mxu0 0.0
        %490 = vmatprep.subr.mxu0 0.0
        %491 = vmatpush1.msra.mxu0 0.0
        %492 = vmatprep.subr.mxu0 0.0
        %493 = vmatpush1.msra.mxu0 0.0
        %494 = vmatprep.subr.mxu0 0.0
        %495 = vmatpush1.msra.mxu0 0.0
        %496 = vmatprep.subr.mxu0 0.0
        %497 = vmatpush1.msra.mxu0 0.0
        %498 = vmatprep.subr.mxu0 0.0
        %499 = vmatpush1.msra.mxu0 0.0
        %500 = vmatprep.subr.mxu0 0.0
        %501 = vmatpush1.msra.mxu0 0.0
        %502 = vmatprep.subr.mxu0 0.0
        %503 = vmatpush1.msra.mxu0 0.0
        %504 = vmatprep.subr.mxu0 0.0
        %505 = vmatpush1.msra.mxu0 0.0
        %506 = vmatprep.mubr.f32.mxu0 0.0
        %507 = vmatmul.mubr.f32.gmra.mrb[0].mxu0 %v369
        %v508 = vpop.f32.mrb[0].mxu0
        %v509 = vadd.f32 %v365, %v508
        %v510 = vpop.f32.mrb[0].mxu0
        %511 = vdwg.mxu0
        %s512 = scalar_lea.vmem %s1, 16
        %v513 = vld [vmem:[%s512] sm:$0xff]
        %514 = vrot.lane.b32.xlu0 %v197, 126
        %v515 = vpop.permute.xlu0 %514
        %516 = vrot.lane.b32.xlu0 %v198, 126
        %v517 = vpop.permute.xlu0 %516
        %518 = vrot.lane.b32.xlu0 %v199, 126
        %v519 = vpop.permute.xlu0 %518
        %520 = vrot.lane.b32.xlu0 %v200, 126
        %v521 = vpop.permute.xlu0 %520
        %vm522 = vcmask 1031168
        %v523 = vsel %vm522, %v515, %v517
        %v524 = vsel %vm522, %v517, %v519
        %v525 = vsel %vm522, %v519, %v521
        %v530 = vsel %vm223, %v513, 0
        %532 = vmatprep.subr.mxu0 %v524
        %533 = vmatpush1.msra.mxu0 %v523
        %534 = vmatprep.subr.mxu0 0.0
        %535 = vmatpush1.msra.mxu0 0.0
        %536 = vmatprep.subr.mxu0 0.0
        %537 = vmatpush1.msra.mxu0 0.0
        %538 = vmatprep.subr.mxu0 0.0
        %539 = vmatpush1.msra.mxu0 0.0
        %540 = vmatprep.subr.mxu0 0.0
        %541 = vmatpush1.msra.mxu0 0.0
        %542 = vmatprep.subr.mxu0 0.0
        %543 = vmatpush1.msra.mxu0 0.0
        %544 = vmatprep.subr.mxu0 0.0
        %545 = vmatpush1.msra.mxu0 0.0
        %546 = vmatprep.subr.mxu0 0.0
        %547 = vmatpush1.msra.mxu0 0.0
        %548 = vmatprep.subr.mxu0 0.0
        %549 = vmatpush1.msra.mxu0 0.0
        %550 = vmatprep.subr.mxu0 0.0
        %551 = vmatpush1.msra.mxu0 0.0
        %552 = vmatprep.subr.mxu0 0.0
        %553 = vmatpush1.msra.mxu0 0.0
        %554 = vmatprep.subr.mxu0 0.0
        %555 = vmatpush1.msra.mxu0 0.0
        %556 = vmatprep.subr.mxu0 0.0
        %557 = vmatpush1.msra.mxu0 0.0
        %558 = vmatprep.subr.mxu0 0.0
        %559 = vmatpush1.msra.mxu0 0.0
        %560 = vmatprep.subr.mxu0 0.0
        %561 = vmatpush1.msra.mxu0 0.0
        %562 = vmatprep.subr.mxu0 0.0
        %563 = vmatpush1.msra.mxu0 0.0
        %564 = vmatprep.subr.mxu0 0.0
        %565 = vmatpush1.msra.mxu0 0.0
        %566 = vmatprep.subr.mxu0 0.0
        %567 = vmatpush1.msra.mxu0 0.0
        %568 = vmatprep.subr.mxu0 0.0
        %569 = vmatpush1.msra.mxu0 0.0
        %570 = vmatprep.subr.mxu0 0.0
        %571 = vmatpush1.msra.mxu0 0.0
        %572 = vmatprep.subr.mxu0 0.0
        %573 = vmatpush1.msra.mxu0 0.0
        %574 = vmatprep.subr.mxu0 0.0
        %575 = vmatpush1.msra.mxu0 0.0
        %576 = vmatprep.subr.mxu0 0.0
        %577 = vmatpush1.msra.mxu0 0.0
        %578 = vmatprep.subr.mxu0 0.0
        %579 = vmatpush1.msra.mxu0 0.0
        %580 = vmatprep.subr.mxu0 0.0
        %581 = vmatpush1.msra.mxu0 0.0
        %582 = vmatprep.subr.mxu0 0.0
        %583 = vmatpush1.msra.mxu0 0.0
        %584 = vmatprep.subr.mxu0 0.0
        %585 = vmatpush1.msra.mxu0 0.0
        %586 = vmatprep.subr.mxu0 0.0
        %587 = vmatpush1.msra.mxu0 0.0
        %588 = vmatprep.subr.mxu0 0.0
        %589 = vmatpush1.msra.mxu0 0.0
        %590 = vmatprep.subr.mxu0 0.0
        %591 = vmatpush1.msra.mxu0 0.0
        %592 = vmatprep.subr.mxu0 0.0
        %593 = vmatpush1.msra.mxu0 0.0
        %594 = vmatprep.subr.mxu0 0.0
        %595 = vmatpush1.msra.mxu0 0.0
        %596 = vmatprep.mubr.f32.mxu0 0.0
        %597 = vmatmul.mubr.f32.gmra.mrb[0].mxu0 %v530
        %v598 = vpop.f32.mrb[0].mxu0
        %v599 = vadd.f32 0.0, %v598
        %v600 = vpop.f32.mrb[0].mxu0
        %v601 = vadd.f32 0.0, %v600
        %602 = vdwg.mxu0
        %603 = vmatprep.subr.mxu0 0.0
        %604 = vmatpush1.msra.mxu0 %v525
        %605 = vmatprep.subr.mxu0 0.0
        %606 = vmatpush1.msra.mxu0 0.0
        %607 = vmatprep.subr.mxu0 0.0
        %608 = vmatpush1.msra.mxu0 0.0
        %609 = vmatprep.subr.mxu0 0.0
        %610 = vmatpush1.msra.mxu0 0.0
        %611 = vmatprep.subr.mxu0 0.0
        %612 = vmatpush1.msra.mxu0 0.0
        %613 = vmatprep.subr.mxu0 0.0
        %614 = vmatpush1.msra.mxu0 0.0
        %615 = vmatprep.subr.mxu0 0.0
        %616 = vmatpush1.msra.mxu0 0.0
        %617 = vmatprep.subr.mxu0 0.0
        %618 = vmatpush1.msra.mxu0 0.0
        %619 = vmatprep.subr.mxu0 0.0
        %620 = vmatpush1.msra.mxu0 0.0
        %621 = vmatprep.subr.mxu0 0.0
        %622 = vmatpush1.msra.mxu0 0.0
        %623 = vmatprep.subr.mxu0 0.0
        %624 = vmatpush1.msra.mxu0 0.0
        %625 = vmatprep.subr.mxu0 0.0
        %626 = vmatpush1.msra.mxu0 0.0
        %627 = vmatprep.subr.mxu0 0.0
        %628 = vmatpush1.msra.mxu0 0.0
        %629 = vmatprep.subr.mxu0 0.0
        %630 = vmatpush1.msra.mxu0 0.0
        %631 = vmatprep.subr.mxu0 0.0
        %632 = vmatpush1.msra.mxu0 0.0
        %633 = vmatprep.subr.mxu0 0.0
        %634 = vmatpush1.msra.mxu0 0.0
        %635 = vmatprep.subr.mxu0 0.0
        %636 = vmatpush1.msra.mxu0 0.0
        %637 = vmatprep.subr.mxu0 0.0
        %638 = vmatpush1.msra.mxu0 0.0
        %639 = vmatprep.subr.mxu0 0.0
        %640 = vmatpush1.msra.mxu0 0.0
        %641 = vmatprep.subr.mxu0 0.0
        %642 = vmatpush1.msra.mxu0 0.0
        %643 = vmatprep.subr.mxu0 0.0
        %644 = vmatpush1.msra.mxu0 0.0
        %645 = vmatprep.subr.mxu0 0.0
        %646 = vmatpush1.msra.mxu0 0.0
        %647 = vmatprep.subr.mxu0 0.0
        %648 = vmatpush1.msra.mxu0 0.0
        %649 = vmatprep.subr.mxu0 0.0
        %650 = vmatpush1.msra.mxu0 0.0
        %651 = vmatprep.subr.mxu0 0.0
        %652 = vmatpush1.msra.mxu0 0.0
        %653 = vmatprep.subr.mxu0 0.0
        %654 = vmatpush1.msra.mxu0 0.0
        %655 = vmatprep.subr.mxu0 0.0
        %656 = vmatpush1.msra.mxu0 0.0
        %657 = vmatprep.subr.mxu0 0.0
        %658 = vmatpush1.msra.mxu0 0.0
        %659 = vmatprep.subr.mxu0 0.0
        %660 = vmatpush1.msra.mxu0 0.0
        %661 = vmatprep.subr.mxu0 0.0
        %662 = vmatpush1.msra.mxu0 0.0
        %663 = vmatprep.subr.mxu0 0.0
        %664 = vmatpush1.msra.mxu0 0.0
        %665 = vmatprep.subr.mxu0 0.0
        %666 = vmatpush1.msra.mxu0 0.0
        %667 = vmatprep.mubr.f32.mxu0 0.0
        %668 = vmatmul.mubr.f32.gmra.mrb[0].mxu0 %v530
        %v669 = vpop.f32.mrb[0].mxu0
        %v670 = vadd.f32 0.0, %v669
        %v671 = vpop.f32.mrb[0].mxu0
        %672 = vdwg.mxu0
        %v673 = vadd.f32 %v438, %v599
        %v674 = vadd.f32 %v440, %v601
        %v675 = vadd.f32 %v509, %v670
        %s676 = scalar_lea.vmem %s1, 24
        %v677 = vld [vmem:[%s676] sm:$0xff]
        %678 = vrot.lane.b32.xlu0 %v197, 110
        %v679 = vpop.permute.xlu0 %678
        %680 = vrot.lane.b32.xlu0 %v198, 110
        %v681 = vpop.permute.xlu0 %680
        %682 = vrot.lane.b32.xlu0 %v199, 110
        %v683 = vpop.permute.xlu0 %682
        %684 = vrot.lane.b32.xlu0 %v200, 110
        %v685 = vpop.permute.xlu0 %684
        %vm686 = vcmask 900096
        %v687 = vsel %vm686, %v679, %v681
        %v688 = vsel %vm686, %v681, %v683
        %v689 = vsel %vm686, %v683, %v685
        %v694 = vsel %vm223, %v677, 0
        %696 = vmatprep.subr.mxu0 %v688
        %697 = vmatpush1.msra.mxu0 %v687
        %698 = vmatprep.subr.mxu0 0.0
        %699 = vmatpush1.msra.mxu0 0.0
        %700 = vmatprep.subr.mxu0 0.0
        %701 = vmatpush1.msra.mxu0 0.0
        %702 = vmatprep.subr.mxu0 0.0
        %703 = vmatpush1.msra.mxu0 0.0
        %704 = vmatprep.subr.mxu0 0.0
        %705 = vmatpush1.msra.mxu0 0.0
        %706 = vmatprep.subr.mxu0 0.0
        %707 = vmatpush1.msra.mxu0 0.0
        %708 = vmatprep.subr.mxu0 0.0
        %709 = vmatpush1.msra.mxu0 0.0
        %710 = vmatprep.subr.mxu0 0.0
        %711 = vmatpush1.msra.mxu0 0.0
        %712 = vmatprep.subr.mxu0 0.0
        %713 = vmatpush1.msra.mxu0 0.0
        %714 = vmatprep.subr.mxu0 0.0
        %715 = vmatpush1.msra.mxu0 0.0
        %716 = vmatprep.subr.mxu0 0.0
        %717 = vmatpush1.msra.mxu0 0.0
        %718 = vmatprep.subr.mxu0 0.0
        %719 = vmatpush1.msra.mxu0 0.0
        %720 = vmatprep.subr.mxu0 0.0
        %721 = vmatpush1.msra.mxu0 0.0
        %722 = vmatprep.subr.mxu0 0.0
        %723 = vmatpush1.msra.mxu0 0.0
        %724 = vmatprep.subr.mxu0 0.0
        %725 = vmatpush1.msra.mxu0 0.0
        %726 = vmatprep.subr.mxu0 0.0
        %727 = vmatpush1.msra.mxu0 0.0
        %728 = vmatprep.subr.mxu0 0.0
        %729 = vmatpush1.msra.mxu0 0.0
        %730 = vmatprep.subr.mxu0 0.0
        %731 = vmatpush1.msra.mxu0 0.0
        %732 = vmatprep.subr.mxu0 0.0
        %733 = vmatpush1.msra.mxu0 0.0
        %734 = vmatprep.subr.mxu0 0.0
        %735 = vmatpush1.msra.mxu0 0.0
        %736 = vmatprep.subr.mxu0 0.0
        %737 = vmatpush1.msra.mxu0 0.0
        %738 = vmatprep.subr.mxu0 0.0
        %739 = vmatpush1.msra.mxu0 0.0
        %740 = vmatprep.subr.mxu0 0.0
        %741 = vmatpush1.msra.mxu0 0.0
        %742 = vmatprep.subr.mxu0 0.0
        %743 = vmatpush1.msra.mxu0 0.0
        %744 = vmatprep.subr.mxu0 0.0
        %745 = vmatpush1.msra.mxu0 0.0
        %746 = vmatprep.subr.mxu0 0.0
        %747 = vmatpush1.msra.mxu0 0.0
        %748 = vmatprep.subr.mxu0 0.0
        %749 = vmatpush1.msra.mxu0 0.0
        %750 = vmatprep.subr.mxu0 0.0
        %751 = vmatpush1.msra.mxu0 0.0
        %752 = vmatprep.subr.mxu0 0.0
        %753 = vmatpush1.msra.mxu0 0.0
        %754 = vmatprep.subr.mxu0 0.0
        %755 = vmatpush1.msra.mxu0 0.0
        %756 = vmatprep.subr.mxu0 0.0
        %757 = vmatpush1.msra.mxu0 0.0
        %758 = vmatprep.subr.mxu0 0.0
        %759 = vmatpush1.msra.mxu0 0.0
        %760 = vmatprep.mubr.f32.mxu0 0.0
        %761 = vmatmul.mubr.f32.gmra.mrb[0].mxu0 %v694
        %v762 = vpop.f32.mrb[0].mxu0
        %v763 = vadd.f32 0.0, %v762
        %v764 = vpop.f32.mrb[0].mxu0
        %v765 = vadd.f32 0.0, %v764
        %766 = vdwg.mxu0
        %767 = vmatprep.subr.mxu0 0.0
        %768 = vmatpush1.msra.mxu0 %v689
        %769 = vmatprep.subr.mxu0 0.0
        %770 = vmatpush1.msra.mxu0 0.0
        %771 = vmatprep.subr.mxu0 0.0
        %772 = vmatpush1.msra.mxu0 0.0
        %773 = vmatprep.subr.mxu0 0.0
        %774 = vmatpush1.msra.mxu0 0.0
        %775 = vmatprep.subr.mxu0 0.0
        %776 = vmatpush1.msra.mxu0 0.0
        %777 = vmatprep.subr.mxu0 0.0
        %778 = vmatpush1.msra.mxu0 0.0
        %779 = vmatprep.subr.mxu0 0.0
        %780 = vmatpush1.msra.mxu0 0.0
        %781 = vmatprep.subr.mxu0 0.0
        %782 = vmatpush1.msra.mxu0 0.0
        %783 = vmatprep.subr.mxu0 0.0
        %784 = vmatpush1.msra.mxu0 0.0
        %785 = vmatprep.subr.mxu0 0.0
        %786 = vmatpush1.msra.mxu0 0.0
        %787 = vmatprep.subr.mxu0 0.0
        %788 = vmatpush1.msra.mxu0 0.0
        %789 = vmatprep.subr.mxu0 0.0
        %790 = vmatpush1.msra.mxu0 0.0
        %791 = vmatprep.subr.mxu0 0.0
        %792 = vmatpush1.msra.mxu0 0.0
        %793 = vmatprep.subr.mxu0 0.0
        %794 = vmatpush1.msra.mxu0 0.0
        %795 = vmatprep.subr.mxu0 0.0
        %796 = vmatpush1.msra.mxu0 0.0
        %797 = vmatprep.subr.mxu0 0.0
        %798 = vmatpush1.msra.mxu0 0.0
        %799 = vmatprep.subr.mxu0 0.0
        %800 = vmatpush1.msra.mxu0 0.0
        %801 = vmatprep.subr.mxu0 0.0
        %802 = vmatpush1.msra.mxu0 0.0
        %803 = vmatprep.subr.mxu0 0.0
        %804 = vmatpush1.msra.mxu0 0.0
        %805 = vmatprep.subr.mxu0 0.0
        %806 = vmatpush1.msra.mxu0 0.0
        %807 = vmatprep.subr.mxu0 0.0
        %808 = vmatpush1.msra.mxu0 0.0
        %809 = vmatprep.subr.mxu0 0.0
        %810 = vmatpush1.msra.mxu0 0.0
        %811 = vmatprep.subr.mxu0 0.0
        %812 = vmatpush1.msra.mxu0 0.0
        %813 = vmatprep.subr.mxu0 0.0
        %814 = vmatpush1.msra.mxu0 0.0
        %815 = vmatprep.subr.mxu0 0.0
        %816 = vmatpush1.msra.mxu0 0.0
        %817 = vmatprep.subr.mxu0 0.0
        %818 = vmatpush1.msra.mxu0 0.0
        %819 = vmatprep.subr.mxu0 0.0
        %820 = vmatpush1.msra.mxu0 0.0
        %821 = vmatprep.subr.mxu0 0.0
        %822 = vmatpush1.msra.mxu0 0.0
        %823 = vmatprep.subr.mxu0 0.0
        %824 = vmatpush1.msra.mxu0 0.0
        %825 = vmatprep.subr.mxu0 0.0
        %826 = vmatpush1.msra.mxu0 0.0
        %827 = vmatprep.subr.mxu0 0.0
        %828 = vmatpush1.msra.mxu0 0.0
        %829 = vmatprep.subr.mxu0 0.0
        %830 = vmatpush1.msra.mxu0 0.0
        %831 = vmatprep.mubr.f32.mxu0 0.0
        %832 = vmatmul.mubr.f32.gmra.mrb[0].mxu0 %v694
        %v833 = vpop.f32.mrb[0].mxu0
        %v834 = vadd.f32 0.0, %v833
        %v835 = vpop.f32.mrb[0].mxu0
        %836 = vdwg.mxu0
        %v837 = vadd.f32 %v673, %v763
        %v838 = vadd.f32 %v674, %v765
        %v839 = vadd.f32 %v675, %v834
        %s840 = scalar_lea.vmem %s1, 32
        %v841 = vld [vmem:[%s840] sm:$0xff]
        %842 = vrot.lane.b32.xlu0 %v197, 109
        %v843 = vpop.permute.xlu0 %842
        %844 = vrot.lane.b32.xlu0 %v198, 109
        %v845 = vpop.permute.xlu0 %844
        %846 = vrot.lane.b32.xlu0 %v199, 109
        %v847 = vpop.permute.xlu0 %846
        %848 = vrot.lane.b32.xlu0 %v200, 109
        %v849 = vpop.permute.xlu0 %848
        %vm850 = vcmask 891904
        %v851 = vsel %vm850, %v843, %v845
        %v852 = vsel %vm850, %v845, %v847
        %v853 = vsel %vm850, %v847, %v849
        %v858 = vsel %vm223, %v841, 0
        %860 = vmatprep.subr.mxu0 %v852
        %861 = vmatpush1.msra.mxu0 %v851
        %862 = vmatprep.subr.mxu0 0.0
        %863 = vmatpush1.msra.mxu0 0.0
        %864 = vmatprep.subr.mxu0 0.0
        %865 = vmatpush1.msra.mxu0 0.0
        %866 = vmatprep.subr.mxu0 0.0
        %867 = vmatpush1.msra.mxu0 0.0
        %868 = vmatprep.subr.mxu0 0.0
        %869 = vmatpush1.msra.mxu0 0.0
        %870 = vmatprep.subr.mxu0 0.0
        %871 = vmatpush1.msra.mxu0 0.0
        %872 = vmatprep.subr.mxu0 0.0
        %873 = vmatpush1.msra.mxu0 0.0
        %874 = vmatprep.subr.mxu0 0.0
        %875 = vmatpush1.msra.mxu0 0.0
        %876 = vmatprep.subr.mxu0 0.0
        %877 = vmatpush1.msra.mxu0 0.0
        %878 = vmatprep.subr.mxu0 0.0
        %879 = vmatpush1.msra.mxu0 0.0
        %880 = vmatprep.subr.mxu0 0.0
        %881 = vmatpush1.msra.mxu0 0.0
        %882 = vmatprep.subr.mxu0 0.0
        %883 = vmatpush1.msra.mxu0 0.0
        %884 = vmatprep.subr.mxu0 0.0
        %885 = vmatpush1.msra.mxu0 0.0
        %886 = vmatprep.subr.mxu0 0.0
        %887 = vmatpush1.msra.mxu0 0.0
        %888 = vmatprep.subr.mxu0 0.0
        %889 = vmatpush1.msra.mxu0 0.0
        %890 = vmatprep.subr.mxu0 0.0
        %891 = vmatpush1.msra.mxu0 0.0
        %892 = vmatprep.subr.mxu0 0.0
        %893 = vmatpush1.msra.mxu0 0.0
        %894 = vmatprep.subr.mxu0 0.0
        %895 = vmatpush1.msra.mxu0 0.0
        %896 = vmatprep.subr.mxu0 0.0
        %897 = vmatpush1.msra.mxu0 0.0
        %898 = vmatprep.subr.mxu0 0.0
        %899 = vmatpush1.msra.mxu0 0.0
        %900 = vmatprep.subr.mxu0 0.0
        %901 = vmatpush1.msra.mxu0 0.0
        %902 = vmatprep.subr.mxu0 0.0
        %903 = vmatpush1.msra.mxu0 0.0
        %904 = vmatprep.subr.mxu0 0.0
        %905 = vmatpush1.msra.mxu0 0.0
        %906 = vmatprep.subr.mxu0 0.0
        %907 = vmatpush1.msra.mxu0 0.0
        %908 = vmatprep.subr.mxu0 0.0
        %909 = vmatpush1.msra.mxu0 0.0
        %910 = vmatprep.subr.mxu0 0.0
        %911 = vmatpush1.msra.mxu0 0.0
        %912 = vmatprep.subr.mxu0 0.0
        %913 = vmatpush1.msra.mxu0 0.0
        %914 = vmatprep.subr.mxu0 0.0
        %915 = vmatpush1.msra.mxu0 0.0
        %916 = vmatprep.subr.mxu0 0.0
        %917 = vmatpush1.msra.mxu0 0.0
        %918 = vmatprep.subr.mxu0 0.0
        %919 = vmatpush1.msra.mxu0 0.0
        %920 = vmatprep.subr.mxu0 0.0
        %921 = vmatpush1.msra.mxu0 0.0
        %922 = vmatprep.subr.mxu0 0.0
        %923 = vmatpush1.msra.mxu0 0.0
        %924 = vmatprep.mubr.f32.mxu0 0.0
        %925 = vmatmul.mubr.f32.gmra.mrb[0].mxu0 %v858
        %v926 = vpop.f32.mrb[0].mxu0
        %v927 = vadd.f32 0.0, %v926
        %v928 = vpop.f32.mrb[0].mxu0
        %v929 = vadd.f32 0.0, %v928
        %930 = vdwg.mxu0
        %931 = vmatprep.subr.mxu0 0.0
        %932 = vmatpush1.msra.mxu0 %v853
        %933 = vmatprep.subr.mxu0 0.0
        %934 = vmatpush1.msra.mxu0 0.0
        %935 = vmatprep.subr.mxu0 0.0
        %936 = vmatpush1.msra.mxu0 0.0
        %937 = vmatprep.subr.mxu0 0.0
        %938 = vmatpush1.msra.mxu0 0.0
        %939 = vmatprep.subr.mxu0 0.0
        %940 = vmatpush1.msra.mxu0 0.0
        %941 = vmatprep.subr.mxu0 0.0
        %942 = vmatpush1.msra.mxu0 0.0
        %943 = vmatprep.subr.mxu0 0.0
        %944 = vmatpush1.msra.mxu0 0.0
        %945 = vmatprep.subr.mxu0 0.0
        %946 = vmatpush1.msra.mxu0 0.0
        %947 = vmatprep.subr.mxu0 0.0
        %948 = vmatpush1.msra.mxu0 0.0
        %949 = vmatprep.subr.mxu0 0.0
        %950 = vmatpush1.msra.mxu0 0.0
        %951 = vmatprep.subr.mxu0 0.0
        %952 = vmatpush1.msra.mxu0 0.0
        %953 = vmatprep.subr.mxu0 0.0
        %954 = vmatpush1.msra.mxu0 0.0
        %955 = vmatprep.subr.mxu0 0.0
        %956 = vmatpush1.msra.mxu0 0.0
        %957 = vmatprep.subr.mxu0 0.0
        %958 = vmatpush1.msra.mxu0 0.0
        %959 = vmatprep.subr.mxu0 0.0
        %960 = vmatpush1.msra.mxu0 0.0
        %961 = vmatprep.subr.mxu0 0.0
        %962 = vmatpush1.msra.mxu0 0.0
        %963 = vmatprep.subr.mxu0 0.0
        %964 = vmatpush1.msra.mxu0 0.0
        %965 = vmatprep.subr.mxu0 0.0
        %966 = vmatpush1.msra.mxu0 0.0
        %967 = vmatprep.subr.mxu0 0.0
        %968 = vmatpush1.msra.mxu0 0.0
        %969 = vmatprep.subr.mxu0 0.0
        %970 = vmatpush1.msra.mxu0 0.0
        %971 = vmatprep.subr.mxu0 0.0
        %972 = vmatpush1.msra.mxu0 0.0
        %973 = vmatprep.subr.mxu0 0.0
        %974 = vmatpush1.msra.mxu0 0.0
        %975 = vmatprep.subr.mxu0 0.0
        %976 = vmatpush1.msra.mxu0 0.0
        %977 = vmatprep.subr.mxu0 0.0
        %978 = vmatpush1.msra.mxu0 0.0
        %979 = vmatprep.subr.mxu0 0.0
        %980 = vmatpush1.msra.mxu0 0.0
        %981 = vmatprep.subr.mxu0 0.0
        %982 = vmatpush1.msra.mxu0 0.0
        %983 = vmatprep.subr.mxu0 0.0
        %984 = vmatpush1.msra.mxu0 0.0
        %985 = vmatprep.subr.mxu0 0.0
        %986 = vmatpush1.msra.mxu0 0.0
        %987 = vmatprep.subr.mxu0 0.0
        %988 = vmatpush1.msra.mxu0 0.0
        %989 = vmatprep.subr.mxu0 0.0
        %990 = vmatpush1.msra.mxu0 0.0
        %991 = vmatprep.subr.mxu0 0.0
        %992 = vmatpush1.msra.mxu0 0.0
        %993 = vmatprep.subr.mxu0 0.0
        %994 = vmatpush1.msra.mxu0 0.0
        %995 = vmatprep.mubr.f32.mxu0 0.0
        %996 = vmatmul.mubr.f32.gmra.mrb[0].mxu0 %v858
        %v997 = vpop.f32.mrb[0].mxu0
        %v998 = vadd.f32 0.0, %v997
        %v999 = vpop.f32.mrb[0].mxu0
        %1000 = vdwg.mxu0
        %v1001 = vadd.f32 %v837, %v927
        %v1002 = vadd.f32 %v838, %v929
        %v1003 = vadd.f32 %v839, %v998
        %s1004 = scalar_lea.vmem %s1, 40
        %v1005 = vld [vmem:[%s1004] sm:$0xff]
        %1006 = vrot.lane.b32.xlu0 %v197, 108
        %v1007 = vpop.permute.xlu0 %1006
        %1008 = vrot.lane.b32.xlu0 %v198, 108
        %v1009 = vpop.permute.xlu0 %1008
        %1010 = vrot.lane.b32.xlu0 %v199, 108
        %v1011 = vpop.permute.xlu0 %1010
        %1012 = vrot.lane.b32.xlu0 %v200, 108
        %v1013 = vpop.permute.xlu0 %1012
        %vm1014 = vcmask 883712
        %v1015 = vsel %vm1014, %v1007, %v1009
        %v1016 = vsel %vm1014, %v1009, %v1011
        %v1017 = vsel %vm1014, %v1011, %v1013
        %v1022 = vsel %vm223, %v1005, 0
        %1024 = vmatprep.subr.mxu0 %v1016
        %1025 = vmatpush1.msra.mxu0 %v1015
        %1026 = vmatprep.subr.mxu0 0.0
        %1027 = vmatpush1.msra.mxu0 0.0
        %1028 = vmatprep.subr.mxu0 0.0
        %1029 = vmatpush1.msra.mxu0 0.0
        %1030 = vmatprep.subr.mxu0 0.0
        %1031 = vmatpush1.msra.mxu0 0.0
        %1032 = vmatprep.subr.mxu0 0.0
        %1033 = vmatpush1.msra.mxu0 0.0
        %1034 = vmatprep.subr.mxu0 0.0
        %1035 = vmatpush1.msra.mxu0 0.0
        %1036 = vmatprep.subr.mxu0 0.0
        %1037 = vmatpush1.msra.mxu0 0.0
        %1038 = vmatprep.subr.mxu0 0.0
        %1039 = vmatpush1.msra.mxu0 0.0
        %1040 = vmatprep.subr.mxu0 0.0
        %1041 = vmatpush1.msra.mxu0 0.0
        %1042 = vmatprep.subr.mxu0 0.0
        %1043 = vmatpush1.msra.mxu0 0.0
        %1044 = vmatprep.subr.mxu0 0.0
        %1045 = vmatpush1.msra.mxu0 0.0
        %1046 = vmatprep.subr.mxu0 0.0
        %1047 = vmatpush1.msra.mxu0 0.0
        %1048 = vmatprep.subr.mxu0 0.0
        %1049 = vmatpush1.msra.mxu0 0.0
        %1050 = vmatprep.subr.mxu0 0.0
        %1051 = vmatpush1.msra.mxu0 0.0
        %1052 = vmatprep.subr.mxu0 0.0
        %1053 = vmatpush1.msra.mxu0 0.0
        %1054 = vmatprep.subr.mxu0 0.0
        %1055 = vmatpush1.msra.mxu0 0.0
        %1056 = vmatprep.subr.mxu0 0.0
        %1057 = vmatpush1.msra.mxu0 0.0
        %1058 = vmatprep.subr.mxu0 0.0
        %1059 = vmatpush1.msra.mxu0 0.0
        %1060 = vmatprep.subr.mxu0 0.0
        %1061 = vmatpush1.msra.mxu0 0.0
        %1062 = vmatprep.subr.mxu0 0.0
        %1063 = vmatpush1.msra.mxu0 0.0
        %1064 = vmatprep.subr.mxu0 0.0
        %1065 = vmatpush1.msra.mxu0 0.0
        %1066 = vmatprep.subr.mxu0 0.0
        %1067 = vmatpush1.msra.mxu0 0.0
        %1068 = vmatprep.subr.mxu0 0.0
        %1069 = vmatpush1.msra.mxu0 0.0
        %1070 = vmatprep.subr.mxu0 0.0
        %1071 = vmatpush1.msra.mxu0 0.0
        %1072 = vmatprep.subr.mxu0 0.0
        %1073 = vmatpush1.msra.mxu0 0.0
        %1074 = vmatprep.subr.mxu0 0.0
        %1075 = vmatpush1.msra.mxu0 0.0
        %1076 = vmatprep.subr.mxu0 0.0
        %1077 = vmatpush1.msra.mxu0 0.0
        %1078 = vmatprep.subr.mxu0 0.0
        %1079 = vmatpush1.msra.mxu0 0.0
        %1080 = vmatprep.subr.mxu0 0.0
        %1081 = vmatpush1.msra.mxu0 0.0
        %1082 = vmatprep.subr.mxu0 0.0
        %1083 = vmatpush1.msra.mxu0 0.0
        %1084 = vmatprep.subr.mxu0 0.0
        %1085 = vmatpush1.msra.mxu0 0.0
        %1086 = vmatprep.subr.mxu0 0.0
        %1087 = vmatpush1.msra.mxu0 0.0
        %1088 = vmatprep.mubr.f32.mxu0 0.0
        %1089 = vmatmul.mubr.f32.gmra.mrb[0].mxu0 %v1022
        %v1090 = vpop.f32.mrb[0].mxu0
        %v1091 = vadd.f32 0.0, %v1090
        %v1092 = vpop.f32.mrb[0].mxu0
        %v1093 = vadd.f32 0.0, %v1092
        %1094 = vdwg.mxu0
        %1095 = vmatprep.subr.mxu0 0.0
        %1096 = vmatpush1.msra.mxu0 %v1017
        %1097 = vmatprep.subr.mxu0 0.0
        %1098 = vmatpush1.msra.mxu0 0.0
        %1099 = vmatprep.subr.mxu0 0.0
        %1100 = vmatpush1.msra.mxu0 0.0
        %1101 = vmatprep.subr.mxu0 0.0
        %1102 = vmatpush1.msra.mxu0 0.0
        %1103 = vmatprep.subr.mxu0 0.0
        %1104 = vmatpush1.msra.mxu0 0.0
        %1105 = vmatprep.subr.mxu0 0.0
        %1106 = vmatpush1.msra.mxu0 0.0
        %1107 = vmatprep.subr.mxu0 0.0
        %1108 = vmatpush1.msra.mxu0 0.0
        %1109 = vmatprep.subr.mxu0 0.0
        %1110 = vmatpush1.msra.mxu0 0.0
        %1111 = vmatprep.subr.mxu0 0.0
        %1112 = vmatpush1.msra.mxu0 0.0
        %1113 = vmatprep.subr.mxu0 0.0
        %1114 = vmatpush1.msra.mxu0 0.0
        %1115 = vmatprep.subr.mxu0 0.0
        %1116 = vmatpush1.msra.mxu0 0.0
        %1117 = vmatprep.subr.mxu0 0.0
        %1118 = vmatpush1.msra.mxu0 0.0
        %1119 = vmatprep.subr.mxu0 0.0
        %1120 = vmatpush1.msra.mxu0 0.0
        %1121 = vmatprep.subr.mxu0 0.0
        %1122 = vmatpush1.msra.mxu0 0.0
        %1123 = vmatprep.subr.mxu0 0.0
        %1124 = vmatpush1.msra.mxu0 0.0
        %1125 = vmatprep.subr.mxu0 0.0
        %1126 = vmatpush1.msra.mxu0 0.0
        %1127 = vmatprep.subr.mxu0 0.0
        %1128 = vmatpush1.msra.mxu0 0.0
        %1129 = vmatprep.subr.mxu0 0.0
        %1130 = vmatpush1.msra.mxu0 0.0
        %1131 = vmatprep.subr.mxu0 0.0
        %1132 = vmatpush1.msra.mxu0 0.0
        %1133 = vmatprep.subr.mxu0 0.0
        %1134 = vmatpush1.msra.mxu0 0.0
        %1135 = vmatprep.subr.mxu0 0.0
        %1136 = vmatpush1.msra.mxu0 0.0
        %1137 = vmatprep.subr.mxu0 0.0
        %1138 = vmatpush1.msra.mxu0 0.0
        %1139 = vmatprep.subr.mxu0 0.0
        %1140 = vmatpush1.msra.mxu0 0.0
        %1141 = vmatprep.subr.mxu0 0.0
        %1142 = vmatpush1.msra.mxu0 0.0
        %1143 = vmatprep.subr.mxu0 0.0
        %1144 = vmatpush1.msra.mxu0 0.0
        %1145 = vmatprep.subr.mxu0 0.0
        %1146 = vmatpush1.msra.mxu0 0.0
        %1147 = vmatprep.subr.mxu0 0.0
        %1148 = vmatpush1.msra.mxu0 0.0
        %1149 = vmatprep.subr.mxu0 0.0
        %1150 = vmatpush1.msra.mxu0 0.0
        %1151 = vmatprep.subr.mxu0 0.0
        %1152 = vmatpush1.msra.mxu0 0.0
        %1153 = vmatprep.subr.mxu0 0.0
        %1154 = vmatpush1.msra.mxu0 0.0
        %1155 = vmatprep.subr.mxu0 0.0
        %1156 = vmatpush1.msra.mxu0 0.0
        %1157 = vmatprep.subr.mxu0 0.0
        %1158 = vmatpush1.msra.mxu0 0.0
        %1159 = vmatprep.mubr.f32.mxu0 0.0
        %1160 = vmatmul.mubr.f32.gmra.mrb[0].mxu0 %v1022
        %v1161 = vpop.f32.mrb[0].mxu0
        %v1162 = vadd.f32 0.0, %v1161
        %v1163 = vpop.f32.mrb[0].mxu0
        %1164 = vdwg.mxu0
        %v1165 = vadd.f32 %v1001, %v1091
        %v1166 = vadd.f32 %v1002, %v1093
        %v1167 = vadd.f32 %v1003, %v1162
        %s1168 = scalar_lea.vmem %s1, 48
        %v1169 = vld [vmem:[%s1168] sm:$0xff]
        %1170 = vrot.lane.b32.xlu0 %v197, 92
        %v1171 = vpop.permute.xlu0 %1170
        %1172 = vrot.lane.b32.xlu0 %v198, 92
        %v1173 = vpop.permute.xlu0 %1172
        %1174 = vrot.lane.b32.xlu0 %v199, 92
        %v1175 = vpop.permute.xlu0 %1174
        %1176 = vrot.lane.b32.xlu0 %v200, 92
        %v1177 = vpop.permute.xlu0 %1176
        %vm1178 = vcmask 752640
        %v1179 = vsel %vm1178, %v1171, %v1173
        %v1180 = vsel %vm1178, %v1173, %v1175
        %v1181 = vsel %vm1178, %v1175, %v1177
        %v1186 = vsel %vm223, %v1169, 0
        %1188 = vmatprep.subr.mxu0 %v1180
        %1189 = vmatpush1.msra.mxu0 %v1179
        %1190 = vmatprep.subr.mxu0 0.0
        %1191 = vmatpush1.msra.mxu0 0.0
        %1192 = vmatprep.subr.mxu0 0.0
        %1193 = vmatpush1.msra.mxu0 0.0
        %1194 = vmatprep.subr.mxu0 0.0
        %1195 = vmatpush1.msra.mxu0 0.0
        %1196 = vmatprep.subr.mxu0 0.0
        %1197 = vmatpush1.msra.mxu0 0.0
        %1198 = vmatprep.subr.mxu0 0.0
        %1199 = vmatpush1.msra.mxu0 0.0
        %1200 = vmatprep.subr.mxu0 0.0
        %1201 = vmatpush1.msra.mxu0 0.0
        %1202 = vmatprep.subr.mxu0 0.0
        %1203 = vmatpush1.msra.mxu0 0.0
        %1204 = vmatprep.subr.mxu0 0.0
        %1205 = vmatpush1.msra.mxu0 0.0
        %1206 = vmatprep.subr.mxu0 0.0
        %1207 = vmatpush1.msra.mxu0 0.0
        %1208 = vmatprep.subr.mxu0 0.0
        %1209 = vmatpush1.msra.mxu0 0.0
        %1210 = vmatprep.subr.mxu0 0.0
        %1211 = vmatpush1.msra.mxu0 0.0
        %1212 = vmatprep.subr.mxu0 0.0
        %1213 = vmatpush1.msra.mxu0 0.0
        %1214 = vmatprep.subr.mxu0 0.0
        %1215 = vmatpush1.msra.mxu0 0.0
        %1216 = vmatprep.subr.mxu0 0.0
        %1217 = vmatpush1.msra.mxu0 0.0
        %1218 = vmatprep.subr.mxu0 0.0
        %1219 = vmatpush1.msra.mxu0 0.0
        %1220 = vmatprep.subr.mxu0 0.0
        %1221 = vmatpush1.msra.mxu0 0.0
        %1222 = vmatprep.subr.mxu0 0.0
        %1223 = vmatpush1.msra.mxu0 0.0
        %1224 = vmatprep.subr.mxu0 0.0
        %1225 = vmatpush1.msra.mxu0 0.0
        %1226 = vmatprep.subr.mxu0 0.0
        %1227 = vmatpush1.msra.mxu0 0.0
        %1228 = vmatprep.subr.mxu0 0.0
        %1229 = vmatpush1.msra.mxu0 0.0
        %1230 = vmatprep.subr.mxu0 0.0
        %1231 = vmatpush1.msra.mxu0 0.0
        %1232 = vmatprep.subr.mxu0 0.0
        %1233 = vmatpush1.msra.mxu0 0.0
        %1234 = vmatprep.subr.mxu0 0.0
        %1235 = vmatpush1.msra.mxu0 0.0
        %1236 = vmatprep.subr.mxu0 0.0
        %1237 = vmatpush1.msra.mxu0 0.0
        %1238 = vmatprep.subr.mxu0 0.0
        %1239 = vmatpush1.msra.mxu0 0.0
        %1240 = vmatprep.subr.mxu0 0.0
        %1241 = vmatpush1.msra.mxu0 0.0
        %1242 = vmatprep.subr.mxu0 0.0
        %1243 = vmatpush1.msra.mxu0 0.0
        %1244 = vmatprep.subr.mxu0 0.0
        %1245 = vmatpush1.msra.mxu0 0.0
        %1246 = vmatprep.subr.mxu0 0.0
        %1247 = vmatpush1.msra.mxu0 0.0
        %1248 = vmatprep.subr.mxu0 0.0
        %1249 = vmatpush1.msra.mxu0 0.0
        %1250 = vmatprep.subr.mxu0 0.0
        %1251 = vmatpush1.msra.mxu0 0.0
        %1252 = vmatprep.mubr.f32.mxu0 0.0
        %1253 = vmatmul.mubr.f32.gmra.mrb[0].mxu0 %v1186
        %v1254 = vpop.f32.mrb[0].mxu0
        %v1255 = vadd.f32 0.0, %v1254
        %v1256 = vpop.f32.mrb[0].mxu0
        %v1257 = vadd.f32 0.0, %v1256
        %1258 = vdwg.mxu0
        %1259 = vmatprep.subr.mxu0 0.0
        %1260 = vmatpush1.msra.mxu0 %v1181
        %1261 = vmatprep.subr.mxu0 0.0
        %1262 = vmatpush1.msra.mxu0 0.0
        %1263 = vmatprep.subr.mxu0 0.0
        %1264 = vmatpush1.msra.mxu0 0.0
        %1265 = vmatprep.subr.mxu0 0.0
        %1266 = vmatpush1.msra.mxu0 0.0
        %1267 = vmatprep.subr.mxu0 0.0
        %1268 = vmatpush1.msra.mxu0 0.0
        %1269 = vmatprep.subr.mxu0 0.0
        %1270 = vmatpush1.msra.mxu0 0.0
        %1271 = vmatprep.subr.mxu0 0.0
        %1272 = vmatpush1.msra.mxu0 0.0
        %1273 = vmatprep.subr.mxu0 0.0
        %1274 = vmatpush1.msra.mxu0 0.0
        %1275 = vmatprep.subr.mxu0 0.0
        %1276 = vmatpush1.msra.mxu0 0.0
        %1277 = vmatprep.subr.mxu0 0.0
        %1278 = vmatpush1.msra.mxu0 0.0
        %1279 = vmatprep.subr.mxu0 0.0
        %1280 = vmatpush1.msra.mxu0 0.0
        %1281 = vmatprep.subr.mxu0 0.0
        %1282 = vmatpush1.msra.mxu0 0.0
        %1283 = vmatprep.subr.mxu0 0.0
        %1284 = vmatpush1.msra.mxu0 0.0
        %1285 = vmatprep.subr.mxu0 0.0
        %1286 = vmatpush1.msra.mxu0 0.0
        %1287 = vmatprep.subr.mxu0 0.0
        %1288 = vmatpush1.msra.mxu0 0.0
        %1289 = vmatprep.subr.mxu0 0.0
        %1290 = vmatpush1.msra.mxu0 0.0
        %1291 = vmatprep.subr.mxu0 0.0
        %1292 = vmatpush1.msra.mxu0 0.0
        %1293 = vmatprep.subr.mxu0 0.0
        %1294 = vmatpush1.msra.mxu0 0.0
        %1295 = vmatprep.subr.mxu0 0.0
        %1296 = vmatpush1.msra.mxu0 0.0
        %1297 = vmatprep.subr.mxu0 0.0
        %1298 = vmatpush1.msra.mxu0 0.0
        %1299 = vmatprep.subr.mxu0 0.0
        %1300 = vmatpush1.msra.mxu0 0.0
        %1301 = vmatprep.subr.mxu0 0.0
        %1302 = vmatpush1.msra.mxu0 0.0
        %1303 = vmatprep.subr.mxu0 0.0
        %1304 = vmatpush1.msra.mxu0 0.0
        %1305 = vmatprep.subr.mxu0 0.0
        %1306 = vmatpush1.msra.mxu0 0.0
        %1307 = vmatprep.subr.mxu0 0.0
        %1308 = vmatpush1.msra.mxu0 0.0
        %1309 = vmatprep.subr.mxu0 0.0
        %1310 = vmatpush1.msra.mxu0 0.0
        %1311 = vmatprep.subr.mxu0 0.0
        %1312 = vmatpush1.msra.mxu0 0.0
        %1313 = vmatprep.subr.mxu0 0.0
        %1314 = vmatpush1.msra.mxu0 0.0
        %1315 = vmatprep.subr.mxu0 0.0
        %1316 = vmatpush1.msra.mxu0 0.0
        %1317 = vmatprep.subr.mxu0 0.0
        %1318 = vmatpush1.msra.mxu0 0.0
        %1319 = vmatprep.subr.mxu0 0.0
        %1320 = vmatpush1.msra.mxu0 0.0
        %1321 = vmatprep.subr.mxu0 0.0
        %1322 = vmatpush1.msra.mxu0 0.0
        %1323 = vmatprep.mubr.f32.mxu0 0.0
        %1324 = vmatmul.mubr.f32.gmra.mrb[0].mxu0 %v1186
        %v1325 = vpop.f32.mrb[0].mxu0
        %v1326 = vadd.f32 0.0, %v1325
        %v1327 = vpop.f32.mrb[0].mxu0
        %1328 = vdwg.mxu0
        %v1329 = vadd.f32 %v1165, %v1255
        %v1330 = vadd.f32 %v1166, %v1257
        %v1331 = vadd.f32 %v1167, %v1326
        %s1332 = scalar_lea.vmem %s1, 56
        %v1333 = vld [vmem:[%s1332] sm:$0xff]
        %1334 = vrot.lane.b32.xlu0 %v197, 91
        %v1335 = vpop.permute.xlu0 %1334
        %1336 = vrot.lane.b32.xlu0 %v198, 91
        %v1337 = vpop.permute.xlu0 %1336
        %1338 = vrot.lane.b32.xlu0 %v199, 91
        %v1339 = vpop.permute.xlu0 %1338
        %1340 = vrot.lane.b32.xlu0 %v200, 91
        %v1341 = vpop.permute.xlu0 %1340
        %vm1342 = vcmask 744448
        %v1343 = vsel %vm1342, %v1335, %v1337
        %v1344 = vsel %vm1342, %v1337, %v1339
        %v1345 = vsel %vm1342, %v1339, %v1341
        %v1350 = vsel %vm223, %v1333, 0
        %1352 = vmatprep.subr.mxu0 %v1344
        %1353 = vmatpush1.msra.mxu0 %v1343
        %1354 = vmatprep.subr.mxu0 0.0
        %1355 = vmatpush1.msra.mxu0 0.0
        %1356 = vmatprep.subr.mxu0 0.0
        %1357 = vmatpush1.msra.mxu0 0.0
        %1358 = vmatprep.subr.mxu0 0.0
        %1359 = vmatpush1.msra.mxu0 0.0
        %1360 = vmatprep.subr.mxu0 0.0
        %1361 = vmatpush1.msra.mxu0 0.0
        %1362 = vmatprep.subr.mxu0 0.0
        %1363 = vmatpush1.msra.mxu0 0.0
        %1364 = vmatprep.subr.mxu0 0.0
        %1365 = vmatpush1.msra.mxu0 0.0
        %1366 = vmatprep.subr.mxu0 0.0
        %1367 = vmatpush1.msra.mxu0 0.0
        %1368 = vmatprep.subr.mxu0 0.0
        %1369 = vmatpush1.msra.mxu0 0.0
        %1370 = vmatprep.subr.mxu0 0.0
        %1371 = vmatpush1.msra.mxu0 0.0
        %1372 = vmatprep.subr.mxu0 0.0
        %1373 = vmatpush1.msra.mxu0 0.0
        %1374 = vmatprep.subr.mxu0 0.0
        %1375 = vmatpush1.msra.mxu0 0.0
        %1376 = vmatprep.subr.mxu0 0.0
        %1377 = vmatpush1.msra.mxu0 0.0
        %1378 = vmatprep.subr.mxu0 0.0
        %1379 = vmatpush1.msra.mxu0 0.0
        %1380 = vmatprep.subr.mxu0 0.0
        %1381 = vmatpush1.msra.mxu0 0.0
        %1382 = vmatprep.subr.mxu0 0.0
        %1383 = vmatpush1.msra.mxu0 0.0
        %1384 = vmatprep.subr.mxu0 0.0
        %1385 = vmatpush1.msra.mxu0 0.0
        %1386 = vmatprep.subr.mxu0 0.0
        %1387 = vmatpush1.msra.mxu0 0.0
        %1388 = vmatprep.subr.mxu0 0.0
        %1389 = vmatpush1.msra.mxu0 0.0
        %1390 = vmatprep.subr.mxu0 0.0
        %1391 = vmatpush1.msra.mxu0 0.0
        %1392 = vmatprep.subr.mxu0 0.0
        %1393 = vmatpush1.msra.mxu0 0.0
        %1394 = vmatprep.subr.mxu0 0.0
        %1395 = vmatpush1.msra.mxu0 0.0
        %1396 = vmatprep.subr.mxu0 0.0
        %1397 = vmatpush1.msra.mxu0 0.0
        %1398 = vmatprep.subr.mxu0 0.0
        %1399 = vmatpush1.msra.mxu0 0.0
        %1400 = vmatprep.subr.mxu0 0.0
        %1401 = vmatpush1.msra.mxu0 0.0
        %1402 = vmatprep.subr.mxu0 0.0
        %1403 = vmatpush1.msra.mxu0 0.0
        %1404 = vmatprep.subr.mxu0 0.0
        %1405 = vmatpush1.msra.mxu0 0.0
        %1406 = vmatprep.subr.mxu0 0.0
        %1407 = vmatpush1.msra.mxu0 0.0
        %1408 = vmatprep.subr.mxu0 0.0
        %1409 = vmatpush1.msra.mxu0 0.0
        %1410 = vmatprep.subr.mxu0 0.0
        %1411 = vmatpush1.msra.mxu0 0.0
        %1412 = vmatprep.subr.mxu0 0.0
        %1413 = vmatpush1.msra.mxu0 0.0
        %1414 = vmatprep.subr.mxu0 0.0
        %1415 = vmatpush1.msra.mxu0 0.0
        %1416 = vmatprep.mubr.f32.mxu0 0.0
        %1417 = vmatmul.mubr.f32.gmra.mrb[0].mxu0 %v1350
        %v1418 = vpop.f32.mrb[0].mxu0
        %v1419 = vadd.f32 0.0, %v1418
        %v1420 = vpop.f32.mrb[0].mxu0
        %v1421 = vadd.f32 0.0, %v1420
        %1422 = vdwg.mxu0
        %1423 = vmatprep.subr.mxu0 0.0
        %1424 = vmatpush1.msra.mxu0 %v1345
        %1425 = vmatprep.subr.mxu0 0.0
        %1426 = vmatpush1.msra.mxu0 0.0
        %1427 = vmatprep.subr.mxu0 0.0
        %1428 = vmatpush1.msra.mxu0 0.0
        %1429 = vmatprep.subr.mxu0 0.0
        %1430 = vmatpush1.msra.mxu0 0.0
        %1431 = vmatprep.subr.mxu0 0.0
        %1432 = vmatpush1.msra.mxu0 0.0
        %1433 = vmatprep.subr.mxu0 0.0
        %1434 = vmatpush1.msra.mxu0 0.0
        %1435 = vmatprep.subr.mxu0 0.0
        %1436 = vmatpush1.msra.mxu0 0.0
        %1437 = vmatprep.subr.mxu0 0.0
        %1438 = vmatpush1.msra.mxu0 0.0
        %1439 = vmatprep.subr.mxu0 0.0
        %1440 = vmatpush1.msra.mxu0 0.0
        %1441 = vmatprep.subr.mxu0 0.0
        %1442 = vmatpush1.msra.mxu0 0.0
        %1443 = vmatprep.subr.mxu0 0.0
        %1444 = vmatpush1.msra.mxu0 0.0
        %1445 = vmatprep.subr.mxu0 0.0
        %1446 = vmatpush1.msra.mxu0 0.0
        %1447 = vmatprep.subr.mxu0 0.0
        %1448 = vmatpush1.msra.mxu0 0.0
        %1449 = vmatprep.subr.mxu0 0.0
        %1450 = vmatpush1.msra.mxu0 0.0
        %1451 = vmatprep.subr.mxu0 0.0
        %1452 = vmatpush1.msra.mxu0 0.0
        %1453 = vmatprep.subr.mxu0 0.0
        %1454 = vmatpush1.msra.mxu0 0.0
        %1455 = vmatprep.subr.mxu0 0.0
        %1456 = vmatpush1.msra.mxu0 0.0
        %1457 = vmatprep.subr.mxu0 0.0
        %1458 = vmatpush1.msra.mxu0 0.0
        %1459 = vmatprep.subr.mxu0 0.0
        %1460 = vmatpush1.msra.mxu0 0.0
        %1461 = vmatprep.subr.mxu0 0.0
        %1462 = vmatpush1.msra.mxu0 0.0
        %1463 = vmatprep.subr.mxu0 0.0
        %1464 = vmatpush1.msra.mxu0 0.0
        %1465 = vmatprep.subr.mxu0 0.0
        %1466 = vmatpush1.msra.mxu0 0.0
        %1467 = vmatprep.subr.mxu0 0.0
        %1468 = vmatpush1.msra.mxu0 0.0
        %1469 = vmatprep.subr.mxu0 0.0
        %1470 = vmatpush1.msra.mxu0 0.0
        %1471 = vmatprep.subr.mxu0 0.0
        %1472 = vmatpush1.msra.mxu0 0.0
        %1473 = vmatprep.subr.mxu0 0.0
        %1474 = vmatpush1.msra.mxu0 0.0
        %1475 = vmatprep.subr.mxu0 0.0
        %1476 = vmatpush1.msra.mxu0 0.0
        %1477 = vmatprep.subr.mxu0 0.0
        %1478 = vmatpush1.msra.mxu0 0.0
        %1479 = vmatprep.subr.mxu0 0.0
        %1480 = vmatpush1.msra.mxu0 0.0
        %1481 = vmatprep.subr.mxu0 0.0
        %1482 = vmatpush1.msra.mxu0 0.0
        %1483 = vmatprep.subr.mxu0 0.0
        %1484 = vmatpush1.msra.mxu0 0.0
        %1485 = vmatprep.subr.mxu0 0.0
        %1486 = vmatpush1.msra.mxu0 0.0
        %1487 = vmatprep.mubr.f32.mxu0 0.0
        %1488 = vmatmul.mubr.f32.gmra.mrb[0].mxu0 %v1350
        %v1489 = vpop.f32.mrb[0].mxu0
        %v1490 = vadd.f32 0.0, %v1489
        %v1491 = vpop.f32.mrb[0].mxu0
        %1492 = vdwg.mxu0
        %v1493 = vadd.f32 %v1329, %v1419
        %v1494 = vadd.f32 %v1330, %v1421
        %v1495 = vadd.f32 %v1331, %v1490
        %s1496 = scalar_lea.vmem %s1, 64
        %v1497 = vld [vmem:[%s1496] sm:$0xff]
        %1498 = vrot.lane.b32.xlu0 %v197, 90
        %v1499 = vpop.permute.xlu0 %1498
        %1500 = vrot.lane.b32.xlu0 %v198, 90
        %v1501 = vpop.permute.xlu0 %1500
        %1502 = vrot.lane.b32.xlu0 %v199, 90
        %v1503 = vpop.permute.xlu0 %1502
        %1504 = vrot.lane.b32.xlu0 %v200, 90
        %v1505 = vpop.permute.xlu0 %1504
        %vm1506 = vcmask 736256
        %v1507 = vsel %vm1506, %v1499, %v1501
        %v1508 = vsel %vm1506, %v1501, %v1503
        %v1509 = vsel %vm1506, %v1503, %v1505
        %v1514 = vsel %vm223, %v1497, 0
        %1516 = vmatprep.subr.mxu0 %v1508
        %1517 = vmatpush1.msra.mxu0 %v1507
        %1518 = vmatprep.subr.mxu0 0.0
        %1519 = vmatpush1.msra.mxu0 0.0
        %1520 = vmatprep.subr.mxu0 0.0
        %1521 = vmatpush1.msra.mxu0 0.0
        %1522 = vmatprep.subr.mxu0 0.0
        %1523 = vmatpush1.msra.mxu0 0.0
        %1524 = vmatprep.subr.mxu0 0.0
        %1525 = vmatpush1.msra.mxu0 0.0
        %1526 = vmatprep.subr.mxu0 0.0
        %1527 = vmatpush1.msra.mxu0 0.0
        %1528 = vmatprep.subr.mxu0 0.0
        %1529 = vmatpush1.msra.mxu0 0.0
        %1530 = vmatprep.subr.mxu0 0.0
        %1531 = vmatpush1.msra.mxu0 0.0
        %1532 = vmatprep.subr.mxu0 0.0
        %1533 = vmatpush1.msra.mxu0 0.0
        %1534 = vmatprep.subr.mxu0 0.0
        %1535 = vmatpush1.msra.mxu0 0.0
        %1536 = vmatprep.subr.mxu0 0.0
        %1537 = vmatpush1.msra.mxu0 0.0
        %1538 = vmatprep.subr.mxu0 0.0
        %1539 = vmatpush1.msra.mxu0 0.0
        %1540 = vmatprep.subr.mxu0 0.0
        %1541 = vmatpush1.msra.mxu0 0.0
        %1542 = vmatprep.subr.mxu0 0.0
        %1543 = vmatpush1.msra.mxu0 0.0
        %1544 = vmatprep.subr.mxu0 0.0
        %1545 = vmatpush1.msra.mxu0 0.0
        %1546 = vmatprep.subr.mxu0 0.0
        %1547 = vmatpush1.msra.mxu0 0.0
        %1548 = vmatprep.subr.mxu0 0.0
        %1549 = vmatpush1.msra.mxu0 0.0
        %1550 = vmatprep.subr.mxu0 0.0
        %1551 = vmatpush1.msra.mxu0 0.0
        %1552 = vmatprep.subr.mxu0 0.0
        %1553 = vmatpush1.msra.mxu0 0.0
        %1554 = vmatprep.subr.mxu0 0.0
        %1555 = vmatpush1.msra.mxu0 0.0
        %1556 = vmatprep.subr.mxu0 0.0
        %1557 = vmatpush1.msra.mxu0 0.0
        %1558 = vmatprep.subr.mxu0 0.0
        %1559 = vmatpush1.msra.mxu0 0.0
        %1560 = vmatprep.subr.mxu0 0.0
        %1561 = vmatpush1.msra.mxu0 0.0
        %1562 = vmatprep.subr.mxu0 0.0
        %1563 = vmatpush1.msra.mxu0 0.0
        %1564 = vmatprep.subr.mxu0 0.0
        %1565 = vmatpush1.msra.mxu0 0.0
        %1566 = vmatprep.subr.mxu0 0.0
        %1567 = vmatpush1.msra.mxu0 0.0
        %1568 = vmatprep.subr.mxu0 0.0
        %1569 = vmatpush1.msra.mxu0 0.0
        %1570 = vmatprep.subr.mxu0 0.0
        %1571 = vmatpush1.msra.mxu0 0.0
        %1572 = vmatprep.subr.mxu0 0.0
        %1573 = vmatpush1.msra.mxu0 0.0
        %1574 = vmatprep.subr.mxu0 0.0
        %1575 = vmatpush1.msra.mxu0 0.0
        %1576 = vmatprep.subr.mxu0 0.0
        %1577 = vmatpush1.msra.mxu0 0.0
        %1578 = vmatprep.subr.mxu0 0.0
        %1579 = vmatpush1.msra.mxu0 0.0
        %1580 = vmatprep.mubr.f32.mxu0 0.0
        %1581 = vmatmul.mubr.f32.gmra.mrb[0].mxu0 %v1514
        %v1582 = vpop.f32.mrb[0].mxu0
        %v1583 = vadd.f32 0.0, %v1582
        %v1584 = vpop.f32.mrb[0].mxu0
        %v1585 = vadd.f32 0.0, %v1584
        %1586 = vdwg.mxu0
        %1587 = vmatprep.subr.mxu0 0.0
        %1588 = vmatpush1.msra.mxu0 %v1509
        %1589 = vmatprep.subr.mxu0 0.0
        %1590 = vmatpush1.msra.mxu0 0.0
        %1591 = vmatprep.subr.mxu0 0.0
        %1592 = vmatpush1.msra.mxu0 0.0
        %1593 = vmatprep.subr.mxu0 0.0
        %1594 = vmatpush1.msra.mxu0 0.0
        %1595 = vmatprep.subr.mxu0 0.0
        %1596 = vmatpush1.msra.mxu0 0.0
        %1597 = vmatprep.subr.mxu0 0.0
        %1598 = vmatpush1.msra.mxu0 0.0
        %1599 = vmatprep.subr.mxu0 0.0
        %1600 = vmatpush1.msra.mxu0 0.0
        %1601 = vmatprep.subr.mxu0 0.0
        %1602 = vmatpush1.msra.mxu0 0.0
        %1603 = vmatprep.subr.mxu0 0.0
        %1604 = vmatpush1.msra.mxu0 0.0
        %1605 = vmatprep.subr.mxu0 0.0
        %1606 = vmatpush1.msra.mxu0 0.0
        %1607 = vmatprep.subr.mxu0 0.0
        %1608 = vmatpush1.msra.mxu0 0.0
        %1609 = vmatprep.subr.mxu0 0.0
        %1610 = vmatpush1.msra.mxu0 0.0
        %1611 = vmatprep.subr.mxu0 0.0
        %1612 = vmatpush1.msra.mxu0 0.0
        %1613 = vmatprep.subr.mxu0 0.0
        %1614 = vmatpush1.msra.mxu0 0.0
        %1615 = vmatprep.subr.mxu0 0.0
        %1616 = vmatpush1.msra.mxu0 0.0
        %1617 = vmatprep.subr.mxu0 0.0
        %1618 = vmatpush1.msra.mxu0 0.0
        %1619 = vmatprep.subr.mxu0 0.0
        %1620 = vmatpush1.msra.mxu0 0.0
        %1621 = vmatprep.subr.mxu0 0.0
        %1622 = vmatpush1.msra.mxu0 0.0
        %1623 = vmatprep.subr.mxu0 0.0
        %1624 = vmatpush1.msra.mxu0 0.0
        %1625 = vmatprep.subr.mxu0 0.0
        %1626 = vmatpush1.msra.mxu0 0.0
        %1627 = vmatprep.subr.mxu0 0.0
        %1628 = vmatpush1.msra.mxu0 0.0
        %1629 = vmatprep.subr.mxu0 0.0
        %1630 = vmatpush1.msra.mxu0 0.0
        %1631 = vmatprep.subr.mxu0 0.0
        %1632 = vmatpush1.msra.mxu0 0.0
        %1633 = vmatprep.subr.mxu0 0.0
        %1634 = vmatpush1.msra.mxu0 0.0
        %1635 = vmatprep.subr.mxu0 0.0
        %1636 = vmatpush1.msra.mxu0 0.0
        %1637 = vmatprep.subr.mxu0 0.0
        %1638 = vmatpush1.msra.mxu0 0.0
        %1639 = vmatprep.subr.mxu0 0.0
        %1640 = vmatpush1.msra.mxu0 0.0
        %1641 = vmatprep.subr.mxu0 0.0
        %1642 = vmatpush1.msra.mxu0 0.0
        %1643 = vmatprep.subr.mxu0 0.0
        %1644 = vmatpush1.msra.mxu0 0.0
        %1645 = vmatprep.subr.mxu0 0.0
        %1646 = vmatpush1.msra.mxu0 0.0
        %1647 = vmatprep.subr.mxu0 0.0
        %1648 = vmatpush1.msra.mxu0 0.0
        %1649 = vmatprep.subr.mxu0 0.0
        %1650 = vmatpush1.msra.mxu0 0.0
        %1651 = vmatprep.mubr.f32.mxu0 0.0
        %1652 = vmatmul.mubr.f32.gmra.mrb[0].mxu0 %v1514
        %v1653 = vpop.f32.mrb[0].mxu0
        %v1654 = vadd.f32 0.0, %v1653
        %v1655 = vpop.f32.mrb[0].mxu0
        %1656 = vdwg.mxu0
        %v1657 = vadd.f32 %v1493, %v1583
        %v1658 = vadd.f32 %v1494, %v1585
        %v1659 = vadd.f32 %v1495, %v1654
        %v1660 = vld [vmem:[%s2] sm:$0xff]
        %1662 = vset.pattern.permute.xlu0 0
        %1663 = vperm.xlu0 %1662, %v1660
        %v1664 = vpop.permute.xlu0 %1663
        %v1666 = vadd.f32 %v1657, %v1664
        %v1667 = vadd.f32 %v1658, %v1664
        %v1668 = vadd.f32 %v1659, %v1664
        %1669 = vst [vmem:[%s187] sm:$0xff] %v1666
        %1670 = vst [vmem:[%s187 + $0x8] sm:$0xff] %v1667
        %1671 = vst [vmem:[%s187 + $0x10] sm:$0xff] %v1668
        %s1672 = sand.u32 %s109, 1
        %s1673 = scalar_lea.sflag [#allocation3], %s1672
        %s1674 = sand.u32 %s109, 1
        %s1675 = smul.addr %s1674, 24
        %s1676 = scalar_lea.vmem [#allocation2], %s1675
        // Predicated region
        $region33: #{tpu_custom_call.1} parent=31 // pred_check
          %p1677 = pneg %p119
        $region34: #{tpu_custom_call.1} parent=31 // pred_check_branch
          %1679 = sbr.rel (%p1677) target = $region36
        $region35: #{tpu_custom_call.1} parent=31 // pred_region
          %s1681 = ssub.s32 384, 384
          %1682 = vsyncadd %s1673, %s1681
          %s1683 = smul.addr %s22, 3
          %s1684 = smul.addr %s21, 3
          %s1685 = sadd.s32 %s1683, %s1684
          %s1686 = smul.addr %s1685, 128
          %s1687 = scalar_lea.hbm %s3, %s1686
          %s1689 = sshll.u32 %s1676, 4
          %s1690 = int_to_ptr.vmem [resolvable:$true] %s1689
          %1692 = dma.vmem_to_hbm [thread:$0]  %s1690, 384, %s1687, %s1673
        $region36: #{tpu_custom_call.1} parent=31 // pred_fallthru
          _
      $region32: #{tpu_custom_call.1} parent=5 // pred_fallthru
        _
      %p1693 = scmp.le.s32.totalorder 2, %s12
      // Predicated region
      $region37: #{tpu_custom_call.1} parent=5 // pred_check
        %p1694 = pneg %p1693
      $region38: #{tpu_custom_call.1} parent=5 // pred_check_branch
        %1696 = sbr.rel (%p1694) target = $region40
      $region39: #{tpu_custom_call.1} parent=5 // pred_region
        %s1697 = ssub.s32 %s12, 2
        // Predicated region
        $region41: #{tpu_custom_call.1} parent=39 // pred_check
          %p1698 = pneg %p125
        $region42: #{tpu_custom_call.1} parent=39 // pred_check_branch
          %1700 = sbr.rel (%p1698) target = $region44
        $region43: #{tpu_custom_call.1} parent=39 // pred_region
          %s1701 = sand.u32 %s110, 1
          %s1702 = scalar_lea.sflag [#allocation3], %s1701
          %s1703 = sand.u32 %s110, 1
          %s1704 = smul.addr %s1703, 24
          %s1705 = scalar_lea.vmem [#allocation2], %s1704
          %1706 = dma.done %s1702, 384
        $region44: #{tpu_custom_call.1} parent=39 // pred_fallthru
          _
      $region40: #{tpu_custom_call.1} parent=5 // pred_fallthru
        _
    $region6: #{tpu_custom_call.1} parent=1 // loop_footer
      %s16 = sadd.s32 1, %s12
    $region7: #{tpu_custom_call.1} parent=1 // loop_footer_branch
      %11 = sbr.rel target = $region3
    $region8: #{tpu_custom_call.1} parent=1 // loop_exit
      _
    %1707 = vsyncpa [#allocation3], 1
    %s1708 = scalar_lea.sflag [#allocation3], 1
    %1709 = vsyncpa %s1708, 1

</llo_original>
